<compile_context>
chip_gen: v7x
topology: tpu7x:2x2x1
jax: 0.10.0
libtpu: 0.0.40
codegen_flags: <defaults>
</compile_context>

<pallas_src>
import numpy as np

import jax
import jax.numpy as jnp
from jax.experimental import pallas as pl
from jax.experimental.pallas import tpu as pltpu

LN_EPS = 1e-5
LANE = 128


def _round_up(v, m):
    return ((v + m - 1) // m) * m


def _pad2(a, rows, cols):
    return jnp.pad(a, ((0, rows - a.shape[0]), (0, cols - a.shape[1])))


# ---------------------------------------------------------------------------
# Fused kernel: all GCN layers + classification head + log_softmax.
# Single grid step; every operand lives fully in VMEM (tiny problem size).
# ---------------------------------------------------------------------------
def make_fused_gcn_kernel(num_layers, hidden_true, classes_true):
    inv_h = 1.0 / float(hidden_true)

    def kernel(adj_ref, x_ref, *refs):
        # refs = [w_0, gamma_0, beta_0, ..., w_{L-1}, gamma_{L-1}, beta_{L-1},
        #         w_out, b_out, o_ref]
        o_ref = refs[-1]
        w_out_ref = refs[-3]
        b_out_ref = refs[-2]

        adj = adj_ref[...]          # bf16 [Np, Np] (0/1, exact in bf16)
        h = x_ref[...]              # bf16 [Np, Fp]

        for l in range(num_layers):
            w_ref = refs[3 * l]
            g_ref = refs[3 * l + 1]
            b_ref = refs[3 * l + 2]

            # MyGCNConv: linear (no bias) then neighbor sum-aggregation (MXU, f32 acc).
            xw = jnp.dot(h, w_ref[...], preferred_element_type=jnp.float32)
            agg = jnp.dot(adj, xw.astype(jnp.bfloat16),
                          preferred_element_type=jnp.float32)

            # LayerNorm over the TRUE hidden width. Padded columns of `agg` are
            # exactly zero (padded W columns are zero), so full-width sums divided
            # by hidden_true give the exact unpadded statistics.
            s1 = jnp.sum(agg, axis=-1, keepdims=True)
            s2 = jnp.sum(agg * agg, axis=-1, keepdims=True)
            mean = s1 * inv_h
            var = s2 * inv_h - mean * mean
            hn = (agg - mean) * jax.lax.rsqrt(var + LN_EPS)
            hn = hn * g_ref[...] + b_ref[...]        # padded gamma/beta are zero

            # ReLU; Dropout(p=0.5) is identity in eval mode.
            # TODO(synk): training-mode dropout (p=0.5) not implemented; eval semantics.
            h = jnp.maximum(hn, 0.0).astype(jnp.bfloat16)

        # Head: Linear (+bias) then log_softmax over the true class columns only.
        logits = jnp.dot(h, w_out_ref[...], preferred_element_type=jnp.float32)
        logits = logits + b_out_ref[...]
        col = jax.lax.broadcasted_iota(jnp.int32, logits.shape, 1)
        logits = jnp.where(col < classes_true, logits, jnp.float32(-1e30))
        m = jnp.max(logits, axis=-1, keepdims=True)
        s = logits - m
        lse = jnp.log(jnp.sum(jnp.exp(s), axis=-1, keepdims=True))
        o_ref[...] = s - lse

    return kernel


# ---------------------------------------------------------------------------
# Wrapper: pad to lane-dense shapes, cast matmul operands to bf16, call kernel.
# ---------------------------------------------------------------------------
@jax.jit
def gcn_forward(x, adj, params):
    n, f = x.shape
    hdim = params["layers"][0]["w"].shape[1]
    cdim = params["w_out"].shape[1]
    num_layers = len(params["layers"])

    n_pad = _round_up(n, LANE)
    f_pad = _round_up(f, LANE)
    h_pad = _round_up(hdim, LANE)
    c_pad = _round_up(cdim, LANE)

    adj_p = _pad2(adj, n_pad, n_pad).astype(jnp.bfloat16)
    x_p = _pad2(x, n_pad, f_pad).astype(jnp.bfloat16)

    args = [adj_p, x_p]
    specs = [
        pl.BlockSpec((n_pad, n_pad), lambda i: (0, 0)),
        pl.BlockSpec((n_pad, f_pad), lambda i: (0, 0)),
    ]
    for li, p in enumerate(params["layers"]):
        in_pad = f_pad if li == 0 else h_pad
        args += [
            _pad2(p["w"], in_pad, h_pad).astype(jnp.bfloat16),
            _pad2(p["gamma"], 1, h_pad).astype(jnp.float32),
            _pad2(p["beta"], 1, h_pad).astype(jnp.float32),
        ]
        specs += [
            pl.BlockSpec((in_pad, h_pad), lambda i: (0, 0)),
            pl.BlockSpec((1, h_pad), lambda i: (0, 0)),
            pl.BlockSpec((1, h_pad), lambda i: (0, 0)),
        ]
    args += [
        _pad2(params["w_out"], h_pad, c_pad).astype(jnp.bfloat16),
        _pad2(params["b_out"], 1, c_pad).astype(jnp.float32),
    ]
    specs += [
        pl.BlockSpec((h_pad, c_pad), lambda i: (0, 0)),
        pl.BlockSpec((1, c_pad), lambda i: (0, 0)),
    ]

    kernel = make_fused_gcn_kernel(num_layers, hdim, cdim)

    out = pl.pallas_call(
        kernel,
        out_shape=jax.ShapeDtypeStruct((n_pad, c_pad), jnp.float32),
        grid=(1,),
        in_specs=specs,
        out_specs=pl.BlockSpec((n_pad, c_pad), lambda i: (0, 0)),
        compiler_params=pltpu.CompilerParams(
            dimension_semantics=("arbitrary",)),
    )(*args)

    return out[:n, :cdim]


# ---------------------------------------------------------------------------
# Parameter init + reference (mirrors the kernel's bf16 matmul casting).
# ---------------------------------------------------------------------------
def init_params(key, num_node_features, hidden_channels, num_classes, num_layers):
    params = {"layers": []}
    for i in range(num_layers):
        in_ch = num_node_features if i == 0 else hidden_channels
        key, kw = jax.random.split(key)
        w = jax.random.normal(kw, (in_ch, hidden_channels), jnp.float32) / np.sqrt(in_ch)
        gamma = jnp.ones((1, hidden_channels), jnp.float32)
        beta = jnp.zeros((1, hidden_channels), jnp.float32)
        params["layers"].append({"w": w, "gamma": gamma, "beta": beta})
    key, kw, kb = jax.random.split(key, 3)
    params["w_out"] = jax.random.normal(
        kw, (hidden_channels, num_classes), jnp.float32) / np.sqrt(hidden_channels)
    params["b_out"] = jax.random.normal(kb, (1, num_classes), jnp.float32) * 0.01
    return params


def reference_forward(x, adj, params):
    adj_b = adj.astype(jnp.bfloat16)
    h = x.astype(jnp.bfloat16)
    for p in params["layers"]:
        xw = jnp.dot(h, p["w"].astype(jnp.bfloat16),
                     preferred_element_type=jnp.float32)
        agg = jnp.dot(adj_b, xw.astype(jnp.bfloat16),
                      preferred_element_type=jnp.float32)
        mean = agg.mean(-1, keepdims=True)
        var = ((agg - mean) ** 2).mean(-1, keepdims=True)
        hn = (agg - mean) * jax.lax.rsqrt(var + LN_EPS) * p["gamma"] + p["beta"]
        h = jnp.maximum(hn, 0.0).astype(jnp.bfloat16)
    logits = jnp.dot(h, params["w_out"].astype(jnp.bfloat16),
                     preferred_element_type=jnp.float32) + params["b_out"]
    return jax.nn.log_softmax(logits, axis=-1)


if __name__ == "__main__":
    N = 128   # number of nodes
    F = 32    # num_node_features
    H = 32    # hidden_channels
    C = 8     # num_classes
    L = 2     # num_layers

    key = jax.random.PRNGKey(0)
    key, kx, ka = jax.random.split(key, 3)

    x = jax.random.normal(kx, (N, F), jnp.float32)
    # Random sparse-ish binary adjacency stored densely (SparseTensor stand-in).
    adj = (jax.random.uniform(ka, (N, N)) < 0.05).astype(jnp.float32)

    params = init_params(key, F, H, C, L)

    out = jax.block_until_ready(gcn_forward(x, adj, params))
    ref = reference_forward(x, adj, params)

    np.testing.assert_allclose(np.asarray(out), np.asarray(ref), rtol=2e-2, atol=2e-2)
    print("KERNEL_OK")
</pallas_src>

<mosaic_0001>
module attributes {stable_mosaic.version = 11 : i64} {
  func.func @kernel(%arg0: i32, %arg1: memref<128x128xbf16, #tpu.memory_space<vmem>>, %arg2: memref<128x128xbf16, #tpu.memory_space<vmem>>, %arg3: memref<128x128xbf16, #tpu.memory_space<vmem>>, %arg4: memref<1x128xf32, #tpu.memory_space<vmem>>, %arg5: memref<1x128xf32, #tpu.memory_space<vmem>>, %arg6: memref<128x128xbf16, #tpu.memory_space<vmem>>, %arg7: memref<1x128xf32, #tpu.memory_space<vmem>>, %arg8: memref<1x128xf32, #tpu.memory_space<vmem>>, %arg9: memref<128x128xbf16, #tpu.memory_space<vmem>>, %arg10: memref<1x128xf32, #tpu.memory_space<vmem>>, %arg11: memref<128x128xf32, #tpu.memory_space<vmem>>) attributes {dimension_semantics = [#tpu.dimension_semantics<arbitrary>], iteration_bounds = array<i64: 1>, scalar_prefetch = 0 : i64, scratch_operands = 0 : i64, tpu.core_type = #tpu.core_type<tc>, window_params = [{pipeline_mode = #tpu.pipeline_mode<synchronous>, transform_indices = @transform_0, window_bounds = array<i64: 128, 128>}, {pipeline_mode = #tpu.pipeline_mode<synchronous>, transform_indices = @transform_1, window_bounds = array<i64: 128, 128>}, {pipeline_mode = #tpu.pipeline_mode<synchronous>, transform_indices = @transform_2, window_bounds = array<i64: 128, 128>}, {pipeline_mode = #tpu.pipeline_mode<synchronous>, transform_indices = @transform_3, window_bounds = array<i64: 1, 128>}, {pipeline_mode = #tpu.pipeline_mode<synchronous>, transform_indices = @transform_4, window_bounds = array<i64: 1, 128>}, {pipeline_mode = #tpu.pipeline_mode<synchronous>, transform_indices = @transform_5, window_bounds = array<i64: 128, 128>}, {pipeline_mode = #tpu.pipeline_mode<synchronous>, transform_indices = @transform_6, window_bounds = array<i64: 1, 128>}, {pipeline_mode = #tpu.pipeline_mode<synchronous>, transform_indices = @transform_7, window_bounds = array<i64: 1, 128>}, {pipeline_mode = #tpu.pipeline_mode<synchronous>, transform_indices = @transform_8, window_bounds = array<i64: 128, 128>}, {pipeline_mode = #tpu.pipeline_mode<synchronous>, transform_indices = @transform_9, window_bounds = array<i64: 1, 128>}, {pipeline_mode = #tpu.pipeline_mode<synchronous>, transform_indices = @transform_10, window_bounds = array<i64: 128, 128>}]} {
    %c0 = arith.constant 0 : index
    %c0_0 = arith.constant 0 : index
    %0 = vector.load %arg1[%c0, %c0_0] : memref<128x128xbf16, #tpu.memory_space<vmem>>, vector<128x128xbf16>
    %c0_1 = arith.constant 0 : index
    %c0_2 = arith.constant 0 : index
    %1 = vector.load %arg2[%c0_1, %c0_2] : memref<128x128xbf16, #tpu.memory_space<vmem>>, vector<128x128xbf16>
    %c0_3 = arith.constant 0 : index
    %c0_4 = arith.constant 0 : index
    %2 = vector.load %arg3[%c0_3, %c0_4] : memref<128x128xbf16, #tpu.memory_space<vmem>>, vector<128x128xbf16>
    %cst = arith.constant dense<0.000000e+00> : vector<128x128xf32>
    %3 = tpu.matmul %1, %2, %cst {dimension_numbers = #tpu.dot_dimension_numbers<[1], [0], [0], [1], [0, 0, 1, 1], [], []>} : vector<128x128xbf16>, vector<128x128xbf16>, vector<128x128xf32> -> vector<128x128xf32>
    %4 = arith.truncf %3 : vector<128x128xf32> to vector<128x128xbf16>
    %cst_5 = arith.constant dense<0.000000e+00> : vector<128x128xf32>
    %5 = tpu.matmul %0, %4, %cst_5 {dimension_numbers = #tpu.dot_dimension_numbers<[1], [0], [0], [1], [0, 0, 1, 1], [], []>} : vector<128x128xbf16>, vector<128x128xbf16>, vector<128x128xf32> -> vector<128x128xf32>
    %cst_6 = arith.constant dense<0.000000e+00> : vector<128xf32>
    %6 = vector.multi_reduction <add>, %5, %cst_6 [1] : vector<128x128xf32> to vector<128xf32>
    %7 = vector.shape_cast %6 : vector<128xf32> to vector<128x1xf32>
    %8 = arith.mulf %5, %5 : vector<128x128xf32>
    %cst_7 = arith.constant dense<0.000000e+00> : vector<128xf32>
    %9 = vector.multi_reduction <add>, %8, %cst_7 [1] : vector<128x128xf32> to vector<128xf32>
    %10 = vector.shape_cast %9 : vector<128xf32> to vector<128x1xf32>
    %cst_8 = arith.constant 3.125000e-02 : f32
    %11 = vector.broadcast %cst_8 : f32 to vector<128x1xf32>
    %12 = arith.mulf %7, %11 : vector<128x1xf32>
    %cst_9 = arith.constant 3.125000e-02 : f32
    %13 = vector.broadcast %cst_9 : f32 to vector<128x1xf32>
    %14 = arith.mulf %10, %13 : vector<128x1xf32>
    %15 = arith.mulf %12, %12 : vector<128x1xf32>
    %16 = arith.subf %14, %15 : vector<128x1xf32>
    %17 = vector.broadcast %12 : vector<128x1xf32> to vector<128x128xf32>
    %18 = arith.subf %5, %17 : vector<128x128xf32>
    %cst_10 = arith.constant 9.99999974E-6 : f32
    %19 = vector.broadcast %cst_10 : f32 to vector<128x1xf32>
    %20 = arith.addf %16, %19 : vector<128x1xf32>
    %21 = math.rsqrt %20 : vector<128x1xf32>
    %22 = vector.broadcast %21 : vector<128x1xf32> to vector<128x128xf32>
    %23 = arith.mulf %18, %22 : vector<128x128xf32>
    %c0_11 = arith.constant 0 : index
    %c0_12 = arith.constant 0 : index
    %24 = vector.load %arg4[%c0_11, %c0_12] : memref<1x128xf32, #tpu.memory_space<vmem>>, vector<1x128xf32>
    %25 = vector.broadcast %24 : vector<1x128xf32> to vector<128x128xf32>
    %26 = arith.mulf %23, %25 : vector<128x128xf32>
    %c0_13 = arith.constant 0 : index
    %c0_14 = arith.constant 0 : index
    %27 = vector.load %arg5[%c0_13, %c0_14] : memref<1x128xf32, #tpu.memory_space<vmem>>, vector<1x128xf32>
    %28 = vector.broadcast %27 : vector<1x128xf32> to vector<128x128xf32>
    %29 = arith.addf %26, %28 : vector<128x128xf32>
    %cst_15 = arith.constant 0.000000e+00 : f32
    %30 = vector.broadcast %cst_15 : f32 to vector<128x128xf32>
    %31 = arith.maximumf %29, %30 : vector<128x128xf32>
    %32 = arith.truncf %31 : vector<128x128xf32> to vector<128x128xbf16>
    %c0_16 = arith.constant 0 : index
    %c0_17 = arith.constant 0 : index
    %33 = vector.load %arg6[%c0_16, %c0_17] : memref<128x128xbf16, #tpu.memory_space<vmem>>, vector<128x128xbf16>
    %cst_18 = arith.constant dense<0.000000e+00> : vector<128x128xf32>
    %34 = tpu.matmul %32, %33, %cst_18 {dimension_numbers = #tpu.dot_dimension_numbers<[1], [0], [0], [1], [0, 0, 1, 1], [], []>} : vector<128x128xbf16>, vector<128x128xbf16>, vector<128x128xf32> -> vector<128x128xf32>
    %35 = arith.truncf %34 : vector<128x128xf32> to vector<128x128xbf16>
    %cst_19 = arith.constant dense<0.000000e+00> : vector<128x128xf32>
    %36 = tpu.matmul %0, %35, %cst_19 {dimension_numbers = #tpu.dot_dimension_numbers<[1], [0], [0], [1], [0, 0, 1, 1], [], []>} : vector<128x128xbf16>, vector<128x128xbf16>, vector<128x128xf32> -> vector<128x128xf32>
    %cst_20 = arith.constant dense<0.000000e+00> : vector<128xf32>
    %37 = vector.multi_reduction <add>, %36, %cst_20 [1] : vector<128x128xf32> to vector<128xf32>
    %38 = vector.shape_cast %37 : vector<128xf32> to vector<128x1xf32>
    %39 = arith.mulf %36, %36 : vector<128x128xf32>
    %cst_21 = arith.constant dense<0.000000e+00> : vector<128xf32>
    %40 = vector.multi_reduction <add>, %39, %cst_21 [1] : vector<128x128xf32> to vector<128xf32>
    %41 = vector.shape_cast %40 : vector<128xf32> to vector<128x1xf32>
    %cst_22 = arith.constant 3.125000e-02 : f32
    %42 = vector.broadcast %cst_22 : f32 to vector<128x1xf32>
    %43 = arith.mulf %38, %42 : vector<128x1xf32>
    %cst_23 = arith.constant 3.125000e-02 : f32
    %44 = vector.broadcast %cst_23 : f32 to vector<128x1xf32>
    %45 = arith.mulf %41, %44 : vector<128x1xf32>
    %46 = arith.mulf %43, %43 : vector<128x1xf32>
    %47 = arith.subf %45, %46 : vector<128x1xf32>
    %48 = vector.broadcast %43 : vector<128x1xf32> to vector<128x128xf32>
    %49 = arith.subf %36, %48 : vector<128x128xf32>
    %cst_24 = arith.constant 9.99999974E-6 : f32
    %50 = vector.broadcast %cst_24 : f32 to vector<128x1xf32>
    %51 = arith.addf %47, %50 : vector<128x1xf32>
    %52 = math.rsqrt %51 : vector<128x1xf32>
    %53 = vector.broadcast %52 : vector<128x1xf32> to vector<128x128xf32>
    %54 = arith.mulf %49, %53 : vector<128x128xf32>
    %c0_25 = arith.constant 0 : index
    %c0_26 = arith.constant 0 : index
    %55 = vector.load %arg7[%c0_25, %c0_26] : memref<1x128xf32, #tpu.memory_space<vmem>>, vector<1x128xf32>
    %56 = vector.broadcast %55 : vector<1x128xf32> to vector<128x128xf32>
    %57 = arith.mulf %54, %56 : vector<128x128xf32>
    %c0_27 = arith.constant 0 : index
    %c0_28 = arith.constant 0 : index
    %58 = vector.load %arg8[%c0_27, %c0_28] : memref<1x128xf32, #tpu.memory_space<vmem>>, vector<1x128xf32>
    %59 = vector.broadcast %58 : vector<1x128xf32> to vector<128x128xf32>
    %60 = arith.addf %57, %59 : vector<128x128xf32>
    %cst_29 = arith.constant 0.000000e+00 : f32
    %61 = vector.broadcast %cst_29 : f32 to vector<128x128xf32>
    %62 = arith.maximumf %60, %61 : vector<128x128xf32>
    %63 = arith.truncf %62 : vector<128x128xf32> to vector<128x128xbf16>
    %c0_30 = arith.constant 0 : index
    %c0_31 = arith.constant 0 : index
    %64 = vector.load %arg9[%c0_30, %c0_31] : memref<128x128xbf16, #tpu.memory_space<vmem>>, vector<128x128xbf16>
    %cst_32 = arith.constant dense<0.000000e+00> : vector<128x128xf32>
    %65 = tpu.matmul %63, %64, %cst_32 {dimension_numbers = #tpu.dot_dimension_numbers<[1], [0], [0], [1], [0, 0, 1, 1], [], []>} : vector<128x128xbf16>, vector<128x128xbf16>, vector<128x128xf32> -> vector<128x128xf32>
    %c0_33 = arith.constant 0 : index
    %c0_34 = arith.constant 0 : index
    %66 = vector.load %arg10[%c0_33, %c0_34] : memref<1x128xf32, #tpu.memory_space<vmem>>, vector<1x128xf32>
    %67 = vector.broadcast %66 : vector<1x128xf32> to vector<128x128xf32>
    %68 = arith.addf %65, %67 : vector<128x128xf32>
    %69 = tpu.iota {dimensions = array<i32: 1>} : vector<128x128xi32>
    %c8_i32 = arith.constant 8 : i32
    %70 = vector.broadcast %c8_i32 : i32 to vector<128x128xi32>
    %71 = arith.cmpi slt, %69, %70 : vector<128x128xi32>
    %cst_35 = arith.constant -1.000000e+30 : f32
    %72 = vector.broadcast %cst_35 : f32 to vector<128x128xf32>
    %73 = arith.select %71, %68, %72 : vector<128x128xi1>, vector<128x128xf32>
    %cst_36 = arith.constant dense<0xFF800000> : vector<128xf32>
    %74 = vector.multi_reduction <maximumf>, %73, %cst_36 [1] : vector<128x128xf32> to vector<128xf32>
    %75 = vector.shape_cast %74 : vector<128xf32> to vector<128x1xf32>
    %76 = vector.broadcast %75 : vector<128x1xf32> to vector<128x128xf32>
    %77 = arith.subf %73, %76 : vector<128x128xf32>
    %78 = math.exp %77 : vector<128x128xf32>
    %cst_37 = arith.constant dense<0.000000e+00> : vector<128xf32>
    %79 = vector.multi_reduction <add>, %78, %cst_37 [1] : vector<128x128xf32> to vector<128xf32>
    %80 = vector.shape_cast %79 : vector<128xf32> to vector<128x1xf32>
    %81 = math.log %80 : vector<128x1xf32>
    %82 = vector.broadcast %81 : vector<128x1xf32> to vector<128x128xf32>
    %83 = arith.subf %77, %82 : vector<128x128xf32>
    %c0_38 = arith.constant 0 : index
    %c0_39 = arith.constant 0 : index
    %84 = vector.load %arg11[%c0_38, %c0_39] : memref<128x128xf32, #tpu.memory_space<vmem>>, vector<128x128xf32>
    tpu.vector_store %arg11[%c0_38, %c0_39], %83 {strides = array<i32>} : memref<128x128xf32, #tpu.memory_space<vmem>>, vector<128x128xf32>,
    return
  }
  func.func @transform_0(%arg0: i32) -> (i32, i32) {
    %c0_i32 = arith.constant 0 : i32
    %c0_i32_0 = arith.constant 0 : i32
    %c0_i32_1 = arith.constant 0 : i32
    return %c0_i32, %c0_i32_0 : i32, i32
  }
  func.func @transform_1(%arg0: i32) -> (i32, i32) {
    %c0_i32 = arith.constant 0 : i32
    %c0_i32_0 = arith.constant 0 : i32
    %c0_i32_1 = arith.constant 0 : i32
    return %c0_i32, %c0_i32_0 : i32, i32
  }
  func.func @transform_2(%arg0: i32) -> (i32, i32) {
    %c0_i32 = arith.constant 0 : i32
    %c0_i32_0 = arith.constant 0 : i32
    %c0_i32_1 = arith.constant 0 : i32
    return %c0_i32, %c0_i32_0 : i32, i32
  }
  func.func @transform_3(%arg0: i32) -> (i32, i32) {
    %c0_i32 = arith.constant 0 : i32
    %c0_i32_0 = arith.constant 0 : i32
    %c0_i32_1 = arith.constant 0 : i32
    return %c0_i32, %c0_i32_0 : i32, i32
  }
  func.func @transform_4(%arg0: i32) -> (i32, i32) {
    %c0_i32 = arith.constant 0 : i32
    %c0_i32_0 = arith.constant 0 : i32
    %c0_i32_1 = arith.constant 0 : i32
    return %c0_i32, %c0_i32_0 : i32, i32
  }
  func.func @transform_5(%arg0: i32) -> (i32, i32) {
    %c0_i32 = arith.constant 0 : i32
    %c0_i32_0 = arith.constant 0 : i32
    %c0_i32_1 = arith.constant 0 : i32
    return %c0_i32, %c0_i32_0 : i32, i32
  }
  func.func @transform_6(%arg0: i32) -> (i32, i32) {
    %c0_i32 = arith.constant 0 : i32
    %c0_i32_0 = arith.constant 0 : i32
    %c0_i32_1 = arith.constant 0 : i32
    return %c0_i32, %c0_i32_0 : i32, i32
  }
  func.func @transform_7(%arg0: i32) -> (i32, i32) {
    %c0_i32 = arith.constant 0 : i32
    %c0_i32_0 = arith.constant 0 : i32
    %c0_i32_1 = arith.constant 0 : i32
    return %c0_i32, %c0_i32_0 : i32, i32
  }
  func.func @transform_8(%arg0: i32) -> (i32, i32) {
    %c0_i32 = arith.constant 0 : i32
    %c0_i32_0 = arith.constant 0 : i32
    %c0_i32_1 = arith.constant 0 : i32
    return %c0_i32, %c0_i32_0 : i32, i32
  }
  func.func @transform_9(%arg0: i32) -> (i32, i32) {
    %c0_i32 = arith.constant 0 : i32
    %c0_i32_0 = arith.constant 0 : i32
    %c0_i32_1 = arith.constant 0 : i32
    return %c0_i32, %c0_i32_0 : i32, i32
  }
  func.func @transform_10(%arg0: i32) -> (i32, i32) {
    %c0_i32 = arith.constant 0 : i32
    %c0_i32_0 = arith.constant 0 : i32
    %c0_i32_1 = arith.constant 0 : i32
    return %c0_i32, %c0_i32_0 : i32, i32
  }
}

</mosaic_0001>

<llo_original>
// kernel: gcn_forward.1
$region0: #{gcn_forward.1}
  #allocation0 [shape = 'u32[]', space=smem, size = 0x4, offset = 0x4, fixed_abs, tag = 'smem constant byte address 0x4 - core index']
  #allocation1 [shape = 'u32[144,128]{1,0:T(1,128)}', space=vmem, size = 0x12000, scoped, tag = 'internal scratch']
  %s0 = inlined_call_operand.vmem [shape: bf16[128,128], index: 0, kind: input, shape index: {}]
  %s1 = inlined_call_operand.vmem [shape: bf16[128,128], index: 1, kind: input, shape index: {}]
  %s2 = inlined_call_operand.vmem [shape: bf16[128,128], index: 2, kind: input, shape index: {}]
  %s3 = inlined_call_operand.vmem [shape: f32[1,128], index: 3, kind: input, shape index: {}]
  %s4 = inlined_call_operand.vmem [shape: f32[1,128], index: 4, kind: input, shape index: {}]
  %s5 = inlined_call_operand.vmem [shape: bf16[128,128], index: 5, kind: input, shape index: {}]
  %s6 = inlined_call_operand.vmem [shape: f32[1,128], index: 6, kind: input, shape index: {}]
  %s7 = inlined_call_operand.vmem [shape: f32[1,128], index: 7, kind: input, shape index: {}]
  %s8 = inlined_call_operand.vmem [shape: bf16[128,128], index: 8, kind: input, shape index: {}]
  %s9 = inlined_call_operand.vmem [shape: f32[1,128], index: 9, kind: input, shape index: {}]
  %s10 = inlined_call_operand.vmem [shape: f32[128,128], index: 10, kind: output, shape index: {}]
  %s11 = sld [smem:[#allocation0]]
  $region50: #{gcn_forward.1} parent=0
    _
  %s13 = ssub.s32 1, %s11
  %s14 = scalar_select 0, %s13, %s11
  // Predicated region
  $region2: #{gcn_forward.1} parent=0 // pred_check
    _
  $region3: #{gcn_forward.1} parent=0 // pred_check_branch
    %16 = sbr.rel (0) target = $region5
  $region4: #{gcn_forward.1} parent=0 // pred_region
    _
  $region5: #{gcn_forward.1} parent=0 // pred_fallthru
    _
  // Predicated region
  $region6: #{gcn_forward.1} parent=0 // pred_check
    _
  $region7: #{gcn_forward.1} parent=0 // pred_check_branch
    %18 = sbr.rel (0) target = $region9
  $region8: #{gcn_forward.1} parent=0 // pred_region
    _
  $region9: #{gcn_forward.1} parent=0 // pred_fallthru
    _
  // Predicated region
  $region10: #{gcn_forward.1} parent=0 // pred_check
    _
  $region11: #{gcn_forward.1} parent=0 // pred_check_branch
    %20 = sbr.rel (0) target = $region13
  $region12: #{gcn_forward.1} parent=0 // pred_region
    _
  $region13: #{gcn_forward.1} parent=0 // pred_fallthru
    _
  // Predicated region
  $region14: #{gcn_forward.1} parent=0 // pred_check
    _
  $region15: #{gcn_forward.1} parent=0 // pred_check_branch
    %22 = sbr.rel (0) target = $region17
  $region16: #{gcn_forward.1} parent=0 // pred_region
    _
  $region17: #{gcn_forward.1} parent=0 // pred_fallthru
    _
  // Predicated region
  $region18: #{gcn_forward.1} parent=0 // pred_check
    _
  $region19: #{gcn_forward.1} parent=0 // pred_check_branch
    %24 = sbr.rel (0) target = $region21
  $region20: #{gcn_forward.1} parent=0 // pred_region
    _
  $region21: #{gcn_forward.1} parent=0 // pred_fallthru
    _
  // Predicated region
  $region22: #{gcn_forward.1} parent=0 // pred_check
    _
  $region23: #{gcn_forward.1} parent=0 // pred_check_branch
    %26 = sbr.rel (0) target = $region25
  $region24: #{gcn_forward.1} parent=0 // pred_region
    _
  $region25: #{gcn_forward.1} parent=0 // pred_fallthru
    _
  // Predicated region
  $region26: #{gcn_forward.1} parent=0 // pred_check
    _
  $region27: #{gcn_forward.1} parent=0 // pred_check_branch
    %28 = sbr.rel (0) target = $region29
  $region28: #{gcn_forward.1} parent=0 // pred_region
    _
  $region29: #{gcn_forward.1} parent=0 // pred_fallthru
    _
  // Predicated region
  $region30: #{gcn_forward.1} parent=0 // pred_check
    _
  $region31: #{gcn_forward.1} parent=0 // pred_check_branch
    %30 = sbr.rel (0) target = $region33
  $region32: #{gcn_forward.1} parent=0 // pred_region
    _
  $region33: #{gcn_forward.1} parent=0 // pred_fallthru
    _
  // Predicated region
  $region34: #{gcn_forward.1} parent=0 // pred_check
    _
  $region35: #{gcn_forward.1} parent=0 // pred_check_branch
    %32 = sbr.rel (0) target = $region37
  $region36: #{gcn_forward.1} parent=0 // pred_region
    _
  $region37: #{gcn_forward.1} parent=0 // pred_fallthru
    _
  // Predicated region
  $region38: #{gcn_forward.1} parent=0 // pred_check
    _
  $region39: #{gcn_forward.1} parent=0 // pred_check_branch
    %34 = sbr.rel (0) target = $region41
  $region40: #{gcn_forward.1} parent=0 // pred_region
    _
  $region41: #{gcn_forward.1} parent=0 // pred_fallthru
    _
  %v36 = vld [vmem:[%s0] sm:$0xf]
  %v37 = vld [vmem:[%s0 + $0x4] sm:$0xf]
  %v38 = vld [vmem:[%s0 + $0x8] sm:$0xf]
  %v39 = vld [vmem:[%s0 + $0xc] sm:$0xf]
  %v40 = vld [vmem:[%s0 + $0x10] sm:$0xf]
  %v41 = vld [vmem:[%s0 + $0x14] sm:$0xf]
  %v42 = vld [vmem:[%s0 + $0x18] sm:$0xf]
  %v43 = vld [vmem:[%s0 + $0x1c] sm:$0xf]
  %v44 = vld [vmem:[%s0 + $0x20] sm:$0xf]
  %v45 = vld [vmem:[%s0 + $0x24] sm:$0xf]
  %v46 = vld [vmem:[%s0 + $0x28] sm:$0xf]
  %v47 = vld [vmem:[%s0 + $0x2c] sm:$0xf]
  %v48 = vld [vmem:[%s0 + $0x30] sm:$0xf]
  %v49 = vld [vmem:[%s0 + $0x34] sm:$0xf]
  %v50 = vld [vmem:[%s0 + $0x38] sm:$0xf]
  %v51 = vld [vmem:[%s0 + $0x3c] sm:$0xf]
  %v52 = vld [vmem:[%s1] sm:$0xf]
  %v53 = vld [vmem:[%s1 + $0x4] sm:$0xf]
  %v54 = vld [vmem:[%s1 + $0x8] sm:$0xf]
  %v55 = vld [vmem:[%s1 + $0xc] sm:$0xf]
  %v56 = vld [vmem:[%s1 + $0x10] sm:$0xf]
  %v57 = vld [vmem:[%s1 + $0x14] sm:$0xf]
  %v58 = vld [vmem:[%s1 + $0x18] sm:$0xf]
  %v59 = vld [vmem:[%s1 + $0x1c] sm:$0xf]
  %v60 = vld [vmem:[%s1 + $0x20] sm:$0xf]
  %v61 = vld [vmem:[%s1 + $0x24] sm:$0xf]
  %v62 = vld [vmem:[%s1 + $0x28] sm:$0xf]
  %v63 = vld [vmem:[%s1 + $0x2c] sm:$0xf]
  %v64 = vld [vmem:[%s1 + $0x30] sm:$0xf]
  %v65 = vld [vmem:[%s1 + $0x34] sm:$0xf]
  %v66 = vld [vmem:[%s1 + $0x38] sm:$0xf]
  %v67 = vld [vmem:[%s1 + $0x3c] sm:$0xf]
  %v68 = vld [vmem:[%s2] sm:$0xf]
  %v69 = vld [vmem:[%s2 + $0x4] sm:$0xf]
  %v70 = vld [vmem:[%s2 + $0x8] sm:$0xf]
  %v71 = vld [vmem:[%s2 + $0xc] sm:$0xf]
  %v72 = vld [vmem:[%s2 + $0x10] sm:$0xf]
  %v73 = vld [vmem:[%s2 + $0x14] sm:$0xf]
  %v74 = vld [vmem:[%s2 + $0x18] sm:$0xf]
  %v75 = vld [vmem:[%s2 + $0x1c] sm:$0xf]
  %v76 = vld [vmem:[%s2 + $0x20] sm:$0xf]
  %v77 = vld [vmem:[%s2 + $0x24] sm:$0xf]
  %v78 = vld [vmem:[%s2 + $0x28] sm:$0xf]
  %v79 = vld [vmem:[%s2 + $0x2c] sm:$0xf]
  %v80 = vld [vmem:[%s2 + $0x30] sm:$0xf]
  %v81 = vld [vmem:[%s2 + $0x34] sm:$0xf]
  %v82 = vld [vmem:[%s2 + $0x38] sm:$0xf]
  %v83 = vld [vmem:[%s2 + $0x3c] sm:$0xf]
  %v100 = vunpack.c.l.b16 %v52
  %v101 = vunpack.c.l.b16 %v53
  %v102 = vunpack.c.l.b16 %v54
  %v103 = vunpack.c.l.b16 %v55
  %v104 = vunpack.c.l.b16 %v56
  %v105 = vunpack.c.l.b16 %v57
  %v106 = vunpack.c.l.b16 %v58
  %v107 = vunpack.c.l.b16 %v59
  %v108 = vunpack.c.l.b16 %v60
  %v109 = vunpack.c.l.b16 %v61
  %v110 = vunpack.c.l.b16 %v62
  %v111 = vunpack.c.l.b16 %v63
  %v112 = vunpack.c.l.b16 %v64
  %v113 = vunpack.c.l.b16 %v65
  %v114 = vunpack.c.l.b16 %v66
  %v115 = vunpack.c.l.b16 %v67
  %v116 = vpack.c.b16 %v101, %v100
  %v117 = vpack.c.b16 %v103, %v102
  %v118 = vpack.c.b16 %v105, %v104
  %v119 = vpack.c.b16 %v107, %v106
  %v120 = vpack.c.b16 %v109, %v108
  %v121 = vpack.c.b16 %v111, %v110
  %v122 = vpack.c.b16 %v113, %v112
  %v123 = vpack.c.b16 %v115, %v114
  %v148 = vunpack.c.l.b16 %v68
  %v149 = vunpack.c.l.b16 %v69
  %v150 = vunpack.c.l.b16 %v70
  %v151 = vunpack.c.l.b16 %v71
  %v152 = vunpack.c.l.b16 %v72
  %v153 = vunpack.c.l.b16 %v73
  %v154 = vunpack.c.l.b16 %v74
  %v155 = vunpack.c.l.b16 %v75
  %v156 = vunpack.c.l.b16 %v76
  %v157 = vunpack.c.l.b16 %v77
  %v158 = vunpack.c.l.b16 %v78
  %v159 = vunpack.c.l.b16 %v79
  %v160 = vunpack.c.l.b16 %v80
  %v161 = vunpack.c.l.b16 %v81
  %v162 = vunpack.c.l.b16 %v82
  %v163 = vunpack.c.l.b16 %v83
  %v164 = vpack.c.b16 %v149, %v148
  %v165 = vpack.c.b16 %v151, %v150
  %v166 = vpack.c.b16 %v153, %v152
  %v167 = vpack.c.b16 %v155, %v154
  %v168 = vpack.c.b16 %v157, %v156
  %v169 = vpack.c.b16 %v159, %v158
  %v170 = vpack.c.b16 %v161, %v160
  %v171 = vpack.c.b16 %v163, %v162
  %180 = vmatprep.subr.bf16.mxu0 0
  %181 = vmatpush1.bf16.msra.mxu0 %v164
  %182 = vmatprep.subr.bf16.mxu0 0
  %183 = vmatpush1.bf16.msra.mxu0 %v165
  %184 = vmatprep.subr.bf16.mxu0 0
  %185 = vmatpush1.bf16.msra.mxu0 %v166
  %186 = vmatprep.subr.bf16.mxu0 0
  %187 = vmatpush1.bf16.msra.mxu0 %v167
  %188 = vmatprep.subr.bf16.mxu0 0
  %189 = vmatpush1.bf16.msra.mxu0 %v168
  %190 = vmatprep.subr.bf16.mxu0 0
  %191 = vmatpush1.bf16.msra.mxu0 %v169
  %192 = vmatprep.subr.bf16.mxu0 0
  %193 = vmatpush1.bf16.msra.mxu0 %v170
  %194 = vmatprep.subr.bf16.mxu0 0
  %195 = vmatpush1.bf16.msra.mxu0 %v171
  %196 = vmatprep.subr.bf16.mxu0 0
  %197 = vmatpush1.bf16.msra.mxu0 0
  %198 = vmatprep.subr.bf16.mxu0 0
  %199 = vmatpush1.bf16.msra.mxu0 0
  %200 = vmatprep.subr.bf16.mxu0 0
  %201 = vmatpush1.bf16.msra.mxu0 0
  %202 = vmatprep.subr.bf16.mxu0 0
  %203 = vmatpush1.bf16.msra.mxu0 0
  %204 = vmatprep.subr.bf16.mxu0 0
  %205 = vmatpush1.bf16.msra.mxu0 0
  %206 = vmatprep.subr.bf16.mxu0 0
  %207 = vmatpush1.bf16.msra.mxu0 0
  %208 = vmatprep.subr.bf16.mxu0 0
  %209 = vmatpush1.bf16.msra.mxu0 0
  %210 = vmatprep.subr.bf16.mxu0 0
  %211 = vmatpush1.bf16.msra.mxu0 0
  %212 = vmatprep.mubr.bf16.mxu0 0
  %213 = vmatmul.mubr.bf16.gmra.mrb[0].mxu0 %v116
  %v214 = vpop.f32.mrb[0].mxu0
  %v215 = vadd.f32 0.0, %v214
  %v216 = vpop.f32.mrb[0].mxu0
  %v217 = vpop.f32.mrb[0].mxu0
  %v218 = vadd.f32 0.0, %v217
  %v219 = vpop.f32.mrb[0].mxu0
  %220 = vmatprep.mubr.bf16.mxu0 0
  %221 = vmatmul.mubr.bf16.gmra.mrb[0].mxu0 %v117
  %v222 = vpop.f32.mrb[0].mxu0
  %v223 = vadd.f32 0.0, %v222
  %v224 = vpop.f32.mrb[0].mxu0
  %v225 = vpop.f32.mrb[0].mxu0
  %v226 = vadd.f32 0.0, %v225
  %v227 = vpop.f32.mrb[0].mxu0
  %228 = vmatprep.mubr.bf16.mxu0 0
  %229 = vmatmul.mubr.bf16.gmra.mrb[0].mxu0 %v118
  %v230 = vpop.f32.mrb[0].mxu0
  %v231 = vadd.f32 0.0, %v230
  %v232 = vpop.f32.mrb[0].mxu0
  %v233 = vpop.f32.mrb[0].mxu0
  %v234 = vadd.f32 0.0, %v233
  %v235 = vpop.f32.mrb[0].mxu0
  %236 = vmatprep.mubr.bf16.mxu0 0
  %237 = vmatmul.mubr.bf16.gmra.mrb[0].mxu0 %v119
  %v238 = vpop.f32.mrb[0].mxu0
  %v239 = vadd.f32 0.0, %v238
  %v240 = vpop.f32.mrb[0].mxu0
  %v241 = vpop.f32.mrb[0].mxu0
  %v242 = vadd.f32 0.0, %v241
  %v243 = vpop.f32.mrb[0].mxu0
  %244 = vmatprep.mubr.bf16.mxu0 0
  %245 = vmatmul.mubr.bf16.gmra.mrb[0].mxu0 %v120
  %v246 = vpop.f32.mrb[0].mxu0
  %v247 = vadd.f32 0.0, %v246
  %v248 = vpop.f32.mrb[0].mxu0
  %v249 = vpop.f32.mrb[0].mxu0
  %v250 = vadd.f32 0.0, %v249
  %v251 = vpop.f32.mrb[0].mxu0
  %252 = vmatprep.mubr.bf16.mxu0 0
  %253 = vmatmul.mubr.bf16.gmra.mrb[0].mxu0 %v121
  %v254 = vpop.f32.mrb[0].mxu0
  %v255 = vadd.f32 0.0, %v254
  %v256 = vpop.f32.mrb[0].mxu0
  %v257 = vpop.f32.mrb[0].mxu0
  %v258 = vadd.f32 0.0, %v257
  %v259 = vpop.f32.mrb[0].mxu0
  %260 = vmatprep.mubr.bf16.mxu0 0
  %261 = vmatmul.mubr.bf16.gmra.mrb[0].mxu0 %v122
  %v262 = vpop.f32.mrb[0].mxu0
  %v263 = vadd.f32 0.0, %v262
  %v264 = vpop.f32.mrb[0].mxu0
  %v265 = vpop.f32.mrb[0].mxu0
  %v266 = vadd.f32 0.0, %v265
  %v267 = vpop.f32.mrb[0].mxu0
  %268 = vmatprep.mubr.bf16.mxu0 0
  %269 = vmatmul.mubr.bf16.gmra.mrb[0].mxu0 %v123
  %v270 = vpop.f32.mrb[0].mxu0
  %v271 = vadd.f32 0.0, %v270
  %v272 = vpop.f32.mrb[0].mxu0
  %v273 = vpop.f32.mrb[0].mxu0
  %v274 = vadd.f32 0.0, %v273
  %v275 = vpop.f32.mrb[0].mxu0
  %276 = vdwg.mxu0
  %v277 = vpack.c.bf16 %v218, %v215
  %v278 = vpack.c.bf16 %v226, %v223
  %v279 = vpack.c.bf16 %v234, %v231
  %v280 = vpack.c.bf16 %v242, %v239
  %v281 = vpack.c.bf16 %v250, %v247
  %v282 = vpack.c.bf16 %v258, %v255
  %v283 = vpack.c.bf16 %v266, %v263
  %v284 = vpack.c.bf16 %v274, %v271
  %v301 = vunpack.c.l.b16 %v36
  %v302 = vunpack.c.l.b16 %v37
  %v303 = vunpack.c.l.b16 %v38
  %v304 = vunpack.c.l.b16 %v39
  %v305 = vunpack.c.l.b16 %v40
  %v306 = vunpack.c.l.b16 %v41
  %v307 = vunpack.c.l.b16 %v42
  %v308 = vunpack.c.l.b16 %v43
  %v309 = vunpack.c.l.b16 %v44
  %v310 = vunpack.c.l.b16 %v45
  %v311 = vunpack.c.l.b16 %v46
  %v312 = vunpack.c.l.b16 %v47
  %v313 = vunpack.c.l.b16 %v48
  %v314 = vunpack.c.l.b16 %v49
  %v315 = vunpack.c.l.b16 %v50
  %v316 = vunpack.c.l.b16 %v51
  %v317 = vpack.c.b16 %v302, %v301
  %v318 = vpack.c.b16 %v304, %v303
  %v319 = vpack.c.b16 %v306, %v305
  %v320 = vpack.c.b16 %v308, %v307
  %v321 = vpack.c.b16 %v310, %v309
  %v322 = vpack.c.b16 %v312, %v311
  %v323 = vpack.c.b16 %v314, %v313
  %v324 = vpack.c.b16 %v316, %v315
  %333 = vmatprep.subr.bf16.mxu0 0
  %334 = vmatpush1.bf16.msra.mxu0 %v277
  %335 = vmatprep.subr.bf16.mxu0 0
  %336 = vmatpush1.bf16.msra.mxu0 %v278
  %337 = vmatprep.subr.bf16.mxu0 0
  %338 = vmatpush1.bf16.msra.mxu0 %v279
  %339 = vmatprep.subr.bf16.mxu0 0
  %340 = vmatpush1.bf16.msra.mxu0 %v280
  %341 = vmatprep.subr.bf16.mxu0 0
  %342 = vmatpush1.bf16.msra.mxu0 %v281
  %343 = vmatprep.subr.bf16.mxu0 0
  %344 = vmatpush1.bf16.msra.mxu0 %v282
  %345 = vmatprep.subr.bf16.mxu0 0
  %346 = vmatpush1.bf16.msra.mxu0 %v283
  %347 = vmatprep.subr.bf16.mxu0 0
  %348 = vmatpush1.bf16.msra.mxu0 %v284
  %349 = vmatprep.subr.bf16.mxu0 0
  %350 = vmatpush1.bf16.msra.mxu0 0
  %351 = vmatprep.subr.bf16.mxu0 0
  %352 = vmatpush1.bf16.msra.mxu0 0
  %353 = vmatprep.subr.bf16.mxu0 0
  %354 = vmatpush1.bf16.msra.mxu0 0
  %355 = vmatprep.subr.bf16.mxu0 0
  %356 = vmatpush1.bf16.msra.mxu0 0
  %357 = vmatprep.subr.bf16.mxu0 0
  %358 = vmatpush1.bf16.msra.mxu0 0
  %359 = vmatprep.subr.bf16.mxu0 0
  %360 = vmatpush1.bf16.msra.mxu0 0
  %361 = vmatprep.subr.bf16.mxu0 0
  %362 = vmatpush1.bf16.msra.mxu0 0
  %363 = vmatprep.subr.bf16.mxu0 0
  %364 = vmatpush1.bf16.msra.mxu0 0
  %365 = vmatprep.mubr.bf16.mxu0 0
  %366 = vmatmul.mubr.bf16.gmra.mrb[0].mxu0 %v317
  %v367 = vpop.f32.mrb[0].mxu0
  %v368 = vadd.f32 0.0, %v367
  %v369 = vpop.f32.mrb[0].mxu0
  %v370 = vpop.f32.mrb[0].mxu0
  %v371 = vadd.f32 0.0, %v370
  %v372 = vpop.f32.mrb[0].mxu0
  %373 = vmatprep.mubr.bf16.mxu0 0
  %374 = vmatmul.mubr.bf16.gmra.mrb[0].mxu0 %v318
  %v375 = vpop.f32.mrb[0].mxu0
  %v376 = vadd.f32 0.0, %v375
  %v377 = vpop.f32.mrb[0].mxu0
  %v378 = vpop.f32.mrb[0].mxu0
  %v379 = vadd.f32 0.0, %v378
  %v380 = vpop.f32.mrb[0].mxu0
  %381 = vmatprep.mubr.bf16.mxu0 0
  %382 = vmatmul.mubr.bf16.gmra.mrb[0].mxu0 %v319
  %v383 = vpop.f32.mrb[0].mxu0
  %v384 = vadd.f32 0.0, %v383
  %v385 = vpop.f32.mrb[0].mxu0
  %v386 = vpop.f32.mrb[0].mxu0
  %v387 = vadd.f32 0.0, %v386
  %v388 = vpop.f32.mrb[0].mxu0
  %389 = vmatprep.mubr.bf16.mxu0 0
  %390 = vmatmul.mubr.bf16.gmra.mrb[0].mxu0 %v320
  %v391 = vpop.f32.mrb[0].mxu0
  %v392 = vadd.f32 0.0, %v391
  %v393 = vpop.f32.mrb[0].mxu0
  %v394 = vpop.f32.mrb[0].mxu0
  %v395 = vadd.f32 0.0, %v394
  %v396 = vpop.f32.mrb[0].mxu0
  %397 = vmatprep.mubr.bf16.mxu0 0
  %398 = vmatmul.mubr.bf16.gmra.mrb[0].mxu0 %v321
  %v399 = vpop.f32.mrb[0].mxu0
  %v400 = vadd.f32 0.0, %v399
  %v401 = vpop.f32.mrb[0].mxu0
  %v402 = vpop.f32.mrb[0].mxu0
  %v403 = vadd.f32 0.0, %v402
  %v404 = vpop.f32.mrb[0].mxu0
  %405 = vmatprep.mubr.bf16.mxu0 0
  %406 = vmatmul.mubr.bf16.gmra.mrb[0].mxu0 %v322
  %v407 = vpop.f32.mrb[0].mxu0
  %v408 = vadd.f32 0.0, %v407
  %v409 = vpop.f32.mrb[0].mxu0
  %v410 = vpop.f32.mrb[0].mxu0
  %v411 = vadd.f32 0.0, %v410
  %v412 = vpop.f32.mrb[0].mxu0
  %413 = vmatprep.mubr.bf16.mxu0 0
  %414 = vmatmul.mubr.bf16.gmra.mrb[0].mxu0 %v323
  %v415 = vpop.f32.mrb[0].mxu0
  %v416 = vadd.f32 0.0, %v415
  %v417 = vpop.f32.mrb[0].mxu0
  %v418 = vpop.f32.mrb[0].mxu0
  %v419 = vadd.f32 0.0, %v418
  %v420 = vpop.f32.mrb[0].mxu0
  %421 = vmatprep.mubr.bf16.mxu0 0
  %422 = vmatmul.mubr.bf16.gmra.mrb[0].mxu0 %v324
  %v423 = vpop.f32.mrb[0].mxu0
  %v424 = vadd.f32 0.0, %v423
  %v425 = vpop.f32.mrb[0].mxu0
  %v426 = vpop.f32.mrb[0].mxu0
  %v427 = vadd.f32 0.0, %v426
  %v428 = vpop.f32.mrb[0].mxu0
  %429 = vdwg.mxu0
  %430 = vadd.xlane.f32.xlu0 %v368
  %v431 = vpop.xlane.xlu0 %430
  %432 = vadd.xlane.f32.xlu0 %v371
  %v433 = vpop.xlane.xlu0 %432
  %434 = vadd.xlane.f32.xlu0 %v376
  %v435 = vpop.xlane.xlu0 %434
  %436 = vadd.xlane.f32.xlu0 %v379
  %v437 = vpop.xlane.xlu0 %436
  %438 = vadd.xlane.f32.xlu0 %v384
  %v439 = vpop.xlane.xlu0 %438
  %440 = vadd.xlane.f32.xlu0 %v387
  %v441 = vpop.xlane.xlu0 %440
  %442 = vadd.xlane.f32.xlu0 %v392
  %v443 = vpop.xlane.xlu0 %442
  %444 = vadd.xlane.f32.xlu0 %v395
  %v445 = vpop.xlane.xlu0 %444
  %446 = vadd.xlane.f32.xlu0 %v400
  %v447 = vpop.xlane.xlu0 %446
  %448 = vadd.xlane.f32.xlu0 %v403
  %v449 = vpop.xlane.xlu0 %448
  %450 = vadd.xlane.f32.xlu0 %v408
  %v451 = vpop.xlane.xlu0 %450
  %452 = vadd.xlane.f32.xlu0 %v411
  %v453 = vpop.xlane.xlu0 %452
  %454 = vadd.xlane.f32.xlu0 %v416
  %v455 = vpop.xlane.xlu0 %454
  %456 = vadd.xlane.f32.xlu0 %v419
  %v457 = vpop.xlane.xlu0 %456
  %458 = vadd.xlane.f32.xlu0 %v424
  %v459 = vpop.xlane.xlu0 %458
  %460 = vadd.xlane.f32.xlu0 %v427
  %v461 = vpop.xlane.xlu0 %460
  %v462 = vmul.f32 %v368, %v368
  %v463 = vmul.f32 %v371, %v371
  %v464 = vmul.f32 %v376, %v376
  %v465 = vmul.f32 %v379, %v379
  %v466 = vmul.f32 %v384, %v384
  %v467 = vmul.f32 %v387, %v387
  %v468 = vmul.f32 %v392, %v392
  %v469 = vmul.f32 %v395, %v395
  %v470 = vmul.f32 %v400, %v400
  %v471 = vmul.f32 %v403, %v403
  %v472 = vmul.f32 %v408, %v408
  %v473 = vmul.f32 %v411, %v411
  %v474 = vmul.f32 %v416, %v416
  %v475 = vmul.f32 %v419, %v419
  %v476 = vmul.f32 %v424, %v424
  %v477 = vmul.f32 %v427, %v427
  %478 = vadd.xlane.f32.xlu0 %v462
  %v479 = vpop.xlane.xlu0 %478
  %480 = vadd.xlane.f32.xlu0 %v463
  %v481 = vpop.xlane.xlu0 %480
  %482 = vadd.xlane.f32.xlu0 %v464
  %v483 = vpop.xlane.xlu0 %482
  %484 = vadd.xlane.f32.xlu0 %v465
  %v485 = vpop.xlane.xlu0 %484
  %486 = vadd.xlane.f32.xlu0 %v466
  %v487 = vpop.xlane.xlu0 %486
  %488 = vadd.xlane.f32.xlu0 %v467
  %v489 = vpop.xlane.xlu0 %488
  %490 = vadd.xlane.f32.xlu0 %v468
  %v491 = vpop.xlane.xlu0 %490
  %492 = vadd.xlane.f32.xlu0 %v469
  %v493 = vpop.xlane.xlu0 %492
  %494 = vadd.xlane.f32.xlu0 %v470
  %v495 = vpop.xlane.xlu0 %494
  %496 = vadd.xlane.f32.xlu0 %v471
  %v497 = vpop.xlane.xlu0 %496
  %498 = vadd.xlane.f32.xlu0 %v472
  %v499 = vpop.xlane.xlu0 %498
  %500 = vadd.xlane.f32.xlu0 %v473
  %v501 = vpop.xlane.xlu0 %500
  %502 = vadd.xlane.f32.xlu0 %v474
  %v503 = vpop.xlane.xlu0 %502
  %504 = vadd.xlane.f32.xlu0 %v475
  %v505 = vpop.xlane.xlu0 %504
  %506 = vadd.xlane.f32.xlu0 %v476
  %v507 = vpop.xlane.xlu0 %506
  %508 = vadd.xlane.f32.xlu0 %v477
  %v509 = vpop.xlane.xlu0 %508
  %v510 = vmul.f32 %v431, 0.03125
  %v511 = vmul.f32 %v433, 0.03125
  %v512 = vmul.f32 %v435, 0.03125
  %v513 = vmul.f32 %v437, 0.03125
  %v514 = vmul.f32 %v439, 0.03125
  %v515 = vmul.f32 %v441, 0.03125
  %v516 = vmul.f32 %v443, 0.03125
  %v517 = vmul.f32 %v445, 0.03125
  %v518 = vmul.f32 %v447, 0.03125
  %v519 = vmul.f32 %v449, 0.03125
  %v520 = vmul.f32 %v451, 0.03125
  %v521 = vmul.f32 %v453, 0.03125
  %v522 = vmul.f32 %v455, 0.03125
  %v523 = vmul.f32 %v457, 0.03125
  %v524 = vmul.f32 %v459, 0.03125
  %v525 = vmul.f32 %v461, 0.03125
  %v526 = vmul.f32 %v479, 0.03125
  %v527 = vmul.f32 %v481, 0.03125
  %v528 = vmul.f32 %v483, 0.03125
  %v529 = vmul.f32 %v485, 0.03125
  %v530 = vmul.f32 %v487, 0.03125
  %v531 = vmul.f32 %v489, 0.03125
  %v532 = vmul.f32 %v491, 0.03125
  %v533 = vmul.f32 %v493, 0.03125
  %v534 = vmul.f32 %v495, 0.03125
  %v535 = vmul.f32 %v497, 0.03125
  %v536 = vmul.f32 %v499, 0.03125
  %v537 = vmul.f32 %v501, 0.03125
  %v538 = vmul.f32 %v503, 0.03125
  %v539 = vmul.f32 %v505, 0.03125
  %v540 = vmul.f32 %v507, 0.03125
  %v541 = vmul.f32 %v509, 0.03125
  %v542 = vmul.f32 %v510, %v510
  %v543 = vmul.f32 %v511, %v511
  %v544 = vmul.f32 %v512, %v512
  %v545 = vmul.f32 %v513, %v513
  %v546 = vmul.f32 %v514, %v514
  %v547 = vmul.f32 %v515, %v515
  %v548 = vmul.f32 %v516, %v516
  %v549 = vmul.f32 %v517, %v517
  %v550 = vmul.f32 %v518, %v518
  %v551 = vmul.f32 %v519, %v519
  %v552 = vmul.f32 %v520, %v520
  %v553 = vmul.f32 %v521, %v521
  %v554 = vmul.f32 %v522, %v522
  %v555 = vmul.f32 %v523, %v523
  %v556 = vmul.f32 %v524, %v524
  %v557 = vmul.f32 %v525, %v525
  %v558 = vsub.f32 %v526, %v542
  %v559 = vsub.f32 %v527, %v543
  %v560 = vsub.f32 %v528, %v544
  %v561 = vsub.f32 %v529, %v545
  %v562 = vsub.f32 %v530, %v546
  %v563 = vsub.f32 %v531, %v547
  %v564 = vsub.f32 %v532, %v548
  %v565 = vsub.f32 %v533, %v549
  %v566 = vsub.f32 %v534, %v550
  %v567 = vsub.f32 %v535, %v551
  %v568 = vsub.f32 %v536, %v552
  %v569 = vsub.f32 %v537, %v553
  %v570 = vsub.f32 %v538, %v554
  %v571 = vsub.f32 %v539, %v555
  %v572 = vsub.f32 %v540, %v556
  %v573 = vsub.f32 %v541, %v557
  %v574 = vsub.f32 %v368, %v510
  %v575 = vsub.f32 %v371, %v511
  %v576 = vsub.f32 %v376, %v512
  %v577 = vsub.f32 %v379, %v513
  %v578 = vsub.f32 %v384, %v514
  %v579 = vsub.f32 %v387, %v515
  %v580 = vsub.f32 %v392, %v516
  %v581 = vsub.f32 %v395, %v517
  %v582 = vsub.f32 %v400, %v518
  %v583 = vsub.f32 %v403, %v519
  %v584 = vsub.f32 %v408, %v520
  %v585 = vsub.f32 %v411, %v521
  %v586 = vsub.f32 %v416, %v522
  %v587 = vsub.f32 %v419, %v523
  %v588 = vsub.f32 %v424, %v524
  %v589 = vsub.f32 %v427, %v525
  %v590 = vadd.f32 %v558, 1e-05
  %v591 = vadd.f32 %v559, 1e-05
  %v592 = vadd.f32 %v560, 1e-05
  %v593 = vadd.f32 %v561, 1e-05
  %v594 = vadd.f32 %v562, 1e-05
  %v595 = vadd.f32 %v563, 1e-05
  %v596 = vadd.f32 %v564, 1e-05
  %v597 = vadd.f32 %v565, 1e-05
  %v598 = vadd.f32 %v566, 1e-05
  %v599 = vadd.f32 %v567, 1e-05
  %v600 = vadd.f32 %v568, 1e-05
  %v601 = vadd.f32 %v569, 1e-05
  %v602 = vadd.f32 %v570, 1e-05
  %v603 = vadd.f32 %v571, 1e-05
  %v604 = vadd.f32 %v572, 1e-05
  %v605 = vadd.f32 %v573, 1e-05
  %v606 = vrsqrt.pop %v590
  %v607 = vrsqrt.pop %v591
  %v608 = vrsqrt.pop %v592
  %v609 = vrsqrt.pop %v593
  %v610 = vrsqrt.pop %v594
  %v611 = vrsqrt.pop %v595
  %v612 = vrsqrt.pop %v596
  %v613 = vrsqrt.pop %v597
  %v614 = vrsqrt.pop %v598
  %v615 = vrsqrt.pop %v599
  %v616 = vrsqrt.pop %v600
  %v617 = vrsqrt.pop %v601
  %v618 = vrsqrt.pop %v602
  %v619 = vrsqrt.pop %v603
  %v620 = vrsqrt.pop %v604
  %v621 = vrsqrt.pop %v605
  %v622 = vmul.f32 %v574, %v606
  %v623 = vmul.f32 %v575, %v607
  %v624 = vmul.f32 %v576, %v608
  %v625 = vmul.f32 %v577, %v609
  %v626 = vmul.f32 %v578, %v610
  %v627 = vmul.f32 %v579, %v611
  %v628 = vmul.f32 %v580, %v612
  %v629 = vmul.f32 %v581, %v613
  %v630 = vmul.f32 %v582, %v614
  %v631 = vmul.f32 %v583, %v615
  %v632 = vmul.f32 %v584, %v616
  %v633 = vmul.f32 %v585, %v617
  %v634 = vmul.f32 %v586, %v618
  %v635 = vmul.f32 %v587, %v619
  %v636 = vmul.f32 %v588, %v620
  %v637 = vmul.f32 %v589, %v621
  %v638 = vld [vmem:[%s3] sm:$0x1]
  %v640 = vlaneseq
  %v641 = vshrl.u32 %v640, 7
  %v642 = vsub.s32 0, %v641
  %v643 = vrot.slane %v638, %v642
  %v645 = vmul.f32 %v622, %v643
  %v646 = vmul.f32 %v623, %v643
  %v647 = vmul.f32 %v624, %v643
  %v648 = vmul.f32 %v625, %v643
  %v649 = vmul.f32 %v626, %v643
  %v650 = vmul.f32 %v627, %v643
  %v651 = vmul.f32 %v628, %v643
  %v652 = vmul.f32 %v629, %v643
  %v653 = vmul.f32 %v630, %v643
  %v654 = vmul.f32 %v631, %v643
  %v655 = vmul.f32 %v632, %v643
  %v656 = vmul.f32 %v633, %v643
  %v657 = vmul.f32 %v634, %v643
  %v658 = vmul.f32 %v635, %v643
  %v659 = vmul.f32 %v636, %v643
  %v660 = vmul.f32 %v637, %v643
  %v661 = vld [vmem:[%s4] sm:$0x1]
  %v663 = vlaneseq
  %v664 = vshrl.u32 %v663, 7
  %v665 = vsub.s32 0, %v664
  %v666 = vrot.slane %v661, %v665
  %v668 = vadd.f32 %v645, %v666
  %v669 = vadd.f32 %v646, %v666
  %v670 = vadd.f32 %v647, %v666
  %v671 = vadd.f32 %v648, %v666
  %v672 = vadd.f32 %v649, %v666
  %v673 = vadd.f32 %v650, %v666
  %v674 = vadd.f32 %v651, %v666
  %v675 = vadd.f32 %v652, %v666
  %v676 = vadd.f32 %v653, %v666
  %v677 = vadd.f32 %v654, %v666
  %v678 = vadd.f32 %v655, %v666
  %v679 = vadd.f32 %v656, %v666
  %v680 = vadd.f32 %v657, %v666
  %v681 = vadd.f32 %v658, %v666
  %v682 = vadd.f32 %v659, %v666
  %v683 = vadd.f32 %v660, %v666
  %v684 = vmax.f32 %v668, 0.0
  %v685 = vmax.f32 %v669, 0.0
  %v686 = vmax.f32 %v670, 0.0
  %v687 = vmax.f32 %v671, 0.0
  %v688 = vmax.f32 %v672, 0.0
  %v689 = vmax.f32 %v673, 0.0
  %v690 = vmax.f32 %v674, 0.0
  %v691 = vmax.f32 %v675, 0.0
  %v692 = vmax.f32 %v676, 0.0
  %v693 = vmax.f32 %v677, 0.0
  %v694 = vmax.f32 %v678, 0.0
  %v695 = vmax.f32 %v679, 0.0
  %v696 = vmax.f32 %v680, 0.0
  %v697 = vmax.f32 %v681, 0.0
  %v698 = vmax.f32 %v682, 0.0
  %v699 = vmax.f32 %v683, 0.0
  %v700 = vpack.c.bf16 %v685, %v684
  %v701 = vpack.c.bf16 %v687, %v686
  %v702 = vpack.c.bf16 %v689, %v688
  %v703 = vpack.c.bf16 %v691, %v690
  %v704 = vpack.c.bf16 %v693, %v692
  %v705 = vpack.c.bf16 %v695, %v694
  %v706 = vpack.c.bf16 %v697, %v696
  %v707 = vpack.c.bf16 %v699, %v698
  %v708 = vld [vmem:[%s5] sm:$0xf]
  %v709 = vld [vmem:[%s5 + $0x4] sm:$0xf]
  %v710 = vld [vmem:[%s5 + $0x8] sm:$0xf]
  %v711 = vld [vmem:[%s5 + $0xc] sm:$0xf]
  %v712 = vld [vmem:[%s5 + $0x10] sm:$0xf]
  %v713 = vld [vmem:[%s5 + $0x14] sm:$0xf]
  %v714 = vld [vmem:[%s5 + $0x18] sm:$0xf]
  %v715 = vld [vmem:[%s5 + $0x1c] sm:$0xf]
  %v716 = vld [vmem:[%s5 + $0x20] sm:$0xf]
  %v717 = vld [vmem:[%s5 + $0x24] sm:$0xf]
  %v718 = vld [vmem:[%s5 + $0x28] sm:$0xf]
  %v719 = vld [vmem:[%s5 + $0x2c] sm:$0xf]
  %v720 = vld [vmem:[%s5 + $0x30] sm:$0xf]
  %v721 = vld [vmem:[%s5 + $0x34] sm:$0xf]
  %v722 = vld [vmem:[%s5 + $0x38] sm:$0xf]
  %v723 = vld [vmem:[%s5 + $0x3c] sm:$0xf]
  %v740 = vunpack.c.l.b16 %v708
  %v741 = vunpack.c.l.b16 %v709
  %v742 = vunpack.c.l.b16 %v710
  %v743 = vunpack.c.l.b16 %v711
  %v744 = vunpack.c.l.b16 %v712
  %v745 = vunpack.c.l.b16 %v713
  %v746 = vunpack.c.l.b16 %v714
  %v747 = vunpack.c.l.b16 %v715
  %v748 = vunpack.c.l.b16 %v716
  %v749 = vunpack.c.l.b16 %v717
  %v750 = vunpack.c.l.b16 %v718
  %v751 = vunpack.c.l.b16 %v719
  %v752 = vunpack.c.l.b16 %v720
  %v753 = vunpack.c.l.b16 %v721
  %v754 = vunpack.c.l.b16 %v722
  %v755 = vunpack.c.l.b16 %v723
  %v756 = vpack.c.b16 %v741, %v740
  %v757 = vpack.c.b16 %v743, %v742
  %v758 = vpack.c.b16 %v745, %v744
  %v759 = vpack.c.b16 %v747, %v746
  %v760 = vpack.c.b16 %v749, %v748
  %v761 = vpack.c.b16 %v751, %v750
  %v762 = vpack.c.b16 %v753, %v752
  %v763 = vpack.c.b16 %v755, %v754
  %772 = vmatprep.subr.bf16.mxu0 0
  %773 = vmatpush1.bf16.msra.mxu0 %v756
  %774 = vmatprep.subr.bf16.mxu0 0
  %775 = vmatpush1.bf16.msra.mxu0 %v757
  %776 = vmatprep.subr.bf16.mxu0 0
  %777 = vmatpush1.bf16.msra.mxu0 %v758
  %778 = vmatprep.subr.bf16.mxu0 0
  %779 = vmatpush1.bf16.msra.mxu0 %v759
  %780 = vmatprep.subr.bf16.mxu0 0
  %781 = vmatpush1.bf16.msra.mxu0 %v760
  %782 = vmatprep.subr.bf16.mxu0 0
  %783 = vmatpush1.bf16.msra.mxu0 %v761
  %784 = vmatprep.subr.bf16.mxu0 0
  %785 = vmatpush1.bf16.msra.mxu0 %v762
  %786 = vmatprep.subr.bf16.mxu0 0
  %787 = vmatpush1.bf16.msra.mxu0 %v763
  %788 = vmatprep.subr.bf16.mxu0 0
  %789 = vmatpush1.bf16.msra.mxu0 0
  %790 = vmatprep.subr.bf16.mxu0 0
  %791 = vmatpush1.bf16.msra.mxu0 0
  %792 = vmatprep.subr.bf16.mxu0 0
  %793 = vmatpush1.bf16.msra.mxu0 0
  %794 = vmatprep.subr.bf16.mxu0 0
  %795 = vmatpush1.bf16.msra.mxu0 0
  %796 = vmatprep.subr.bf16.mxu0 0
  %797 = vmatpush1.bf16.msra.mxu0 0
  %798 = vmatprep.subr.bf16.mxu0 0
  %799 = vmatpush1.bf16.msra.mxu0 0
  %800 = vmatprep.subr.bf16.mxu0 0
  %801 = vmatpush1.bf16.msra.mxu0 0
  %802 = vmatprep.subr.bf16.mxu0 0
  %803 = vmatpush1.bf16.msra.mxu0 0
  %804 = vmatprep.mubr.bf16.mxu0 0
  %805 = vmatmul.mubr.bf16.gmra.mrb[0].mxu0 %v700
  %v806 = vpop.f32.mrb[0].mxu0
  %v807 = vadd.f32 0.0, %v806
  %v808 = vpop.f32.mrb[0].mxu0
  %v809 = vpop.f32.mrb[0].mxu0
  %v810 = vadd.f32 0.0, %v809
  %v811 = vpop.f32.mrb[0].mxu0
  %812 = vmatprep.mubr.bf16.mxu0 0
  %813 = vmatmul.mubr.bf16.gmra.mrb[0].mxu0 %v701
  %v814 = vpop.f32.mrb[0].mxu0
  %v815 = vadd.f32 0.0, %v814
  %v816 = vpop.f32.mrb[0].mxu0
  %v817 = vpop.f32.mrb[0].mxu0
  %v818 = vadd.f32 0.0, %v817
  %v819 = vpop.f32.mrb[0].mxu0
  %820 = vmatprep.mubr.bf16.mxu0 0
  %821 = vmatmul.mubr.bf16.gmra.mrb[0].mxu0 %v702
  %v822 = vpop.f32.mrb[0].mxu0
  %v823 = vadd.f32 0.0, %v822
  %v824 = vpop.f32.mrb[0].mxu0
  %v825 = vpop.f32.mrb[0].mxu0
  %v826 = vadd.f32 0.0, %v825
  %v827 = vpop.f32.mrb[0].mxu0
  %828 = vmatprep.mubr.bf16.mxu0 0
  %829 = vmatmul.mubr.bf16.gmra.mrb[0].mxu0 %v703
  %v830 = vpop.f32.mrb[0].mxu0
  %v831 = vadd.f32 0.0, %v830
  %v832 = vpop.f32.mrb[0].mxu0
  %v833 = vpop.f32.mrb[0].mxu0
  %v834 = vadd.f32 0.0, %v833
  %v835 = vpop.f32.mrb[0].mxu0
  %836 = vmatprep.mubr.bf16.mxu0 0
  %837 = vmatmul.mubr.bf16.gmra.mrb[0].mxu0 %v704
  %v838 = vpop.f32.mrb[0].mxu0
  %v839 = vadd.f32 0.0, %v838
  %v840 = vpop.f32.mrb[0].mxu0
  %v841 = vpop.f32.mrb[0].mxu0
  %v842 = vadd.f32 0.0, %v841
  %v843 = vpop.f32.mrb[0].mxu0
  %844 = vmatprep.mubr.bf16.mxu0 0
  %845 = vmatmul.mubr.bf16.gmra.mrb[0].mxu0 %v705
  %v846 = vpop.f32.mrb[0].mxu0
  %v847 = vadd.f32 0.0, %v846
  %v848 = vpop.f32.mrb[0].mxu0
  %v849 = vpop.f32.mrb[0].mxu0
  %v850 = vadd.f32 0.0, %v849
  %v851 = vpop.f32.mrb[0].mxu0
  %852 = vmatprep.mubr.bf16.mxu0 0
  %853 = vmatmul.mubr.bf16.gmra.mrb[0].mxu0 %v706
  %v854 = vpop.f32.mrb[0].mxu0
  %v855 = vadd.f32 0.0, %v854
  %v856 = vpop.f32.mrb[0].mxu0
  %v857 = vpop.f32.mrb[0].mxu0
  %v858 = vadd.f32 0.0, %v857
  %v859 = vpop.f32.mrb[0].mxu0
  %860 = vmatprep.mubr.bf16.mxu0 0
  %861 = vmatmul.mubr.bf16.gmra.mrb[0].mxu0 %v707
  %v862 = vpop.f32.mrb[0].mxu0
  %v863 = vadd.f32 0.0, %v862
  %v864 = vpop.f32.mrb[0].mxu0
  %v865 = vpop.f32.mrb[0].mxu0
  %v866 = vadd.f32 0.0, %v865
  %v867 = vpop.f32.mrb[0].mxu0
  %868 = vdwg.mxu0
  %v869 = vpack.c.bf16 %v810, %v807
  %v870 = vpack.c.bf16 %v818, %v815
  %v871 = vpack.c.bf16 %v826, %v823
  %v872 = vpack.c.bf16 %v834, %v831
  %v873 = vpack.c.bf16 %v842, %v839
  %v874 = vpack.c.bf16 %v850, %v847
  %v875 = vpack.c.bf16 %v858, %v855
  %v876 = vpack.c.bf16 %v866, %v863
  %877 = vmatprep.subr.bf16.mxu0 0
  %878 = vmatpush1.bf16.msra.mxu0 %v869
  %879 = vmatprep.subr.bf16.mxu0 0
  %880 = vmatpush1.bf16.msra.mxu0 %v870
  %881 = vmatprep.subr.bf16.mxu0 0
  %882 = vmatpush1.bf16.msra.mxu0 %v871
  %883 = vmatprep.subr.bf16.mxu0 0
  %884 = vmatpush1.bf16.msra.mxu0 %v872
  %885 = vmatprep.subr.bf16.mxu0 0
  %886 = vmatpush1.bf16.msra.mxu0 %v873
  %887 = vmatprep.subr.bf16.mxu0 0
  %888 = vmatpush1.bf16.msra.mxu0 %v874
  %889 = vmatprep.subr.bf16.mxu0 0
  %890 = vmatpush1.bf16.msra.mxu0 %v875
  %891 = vmatprep.subr.bf16.mxu0 0
  %892 = vmatpush1.bf16.msra.mxu0 %v876
  %893 = vmatprep.subr.bf16.mxu0 0
  %894 = vmatpush1.bf16.msra.mxu0 0
  %895 = vmatprep.subr.bf16.mxu0 0
  %896 = vmatpush1.bf16.msra.mxu0 0
  %897 = vmatprep.subr.bf16.mxu0 0
  %898 = vmatpush1.bf16.msra.mxu0 0
  %899 = vmatprep.subr.bf16.mxu0 0
  %900 = vmatpush1.bf16.msra.mxu0 0
  %901 = vmatprep.subr.bf16.mxu0 0
  %902 = vmatpush1.bf16.msra.mxu0 0
  %903 = vmatprep.subr.bf16.mxu0 0
  %904 = vmatpush1.bf16.msra.mxu0 0
  %905 = vmatprep.subr.bf16.mxu0 0
  %906 = vmatpush1.bf16.msra.mxu0 0
  %907 = vmatprep.subr.bf16.mxu0 0
  %908 = vmatpush1.bf16.msra.mxu0 0
  %909 = vmatprep.mubr.bf16.mxu0 0
  %910 = vmatmul.mubr.bf16.gmra.mrb[0].mxu0 %v317
  %v911 = vpop.f32.mrb[0].mxu0
  %v912 = vadd.f32 0.0, %v911
  %v913 = vpop.f32.mrb[0].mxu0
  %v914 = vpop.f32.mrb[0].mxu0
  %v915 = vadd.f32 0.0, %v914
  %v916 = vpop.f32.mrb[0].mxu0
  %917 = vmatprep.mubr.bf16.mxu0 0
  %918 = vmatmul.mubr.bf16.gmra.mrb[0].mxu0 %v318
  %v919 = vpop.f32.mrb[0].mxu0
  %v920 = vadd.f32 0.0, %v919
  %v921 = vpop.f32.mrb[0].mxu0
  %v922 = vpop.f32.mrb[0].mxu0
  %v923 = vadd.f32 0.0, %v922
  %v924 = vpop.f32.mrb[0].mxu0
  %925 = vmatprep.mubr.bf16.mxu0 0
  %926 = vmatmul.mubr.bf16.gmra.mrb[0].mxu0 %v319
  %v927 = vpop.f32.mrb[0].mxu0
  %v928 = vadd.f32 0.0, %v927
  %v929 = vpop.f32.mrb[0].mxu0
  %v930 = vpop.f32.mrb[0].mxu0
  %v931 = vadd.f32 0.0, %v930
  %v932 = vpop.f32.mrb[0].mxu0
  %933 = vmatprep.mubr.bf16.mxu0 0
  %934 = vmatmul.mubr.bf16.gmra.mrb[0].mxu0 %v320
  %v935 = vpop.f32.mrb[0].mxu0
  %v936 = vadd.f32 0.0, %v935
  %v937 = vpop.f32.mrb[0].mxu0
  %v938 = vpop.f32.mrb[0].mxu0
  %v939 = vadd.f32 0.0, %v938
  %v940 = vpop.f32.mrb[0].mxu0
  %941 = vmatprep.mubr.bf16.mxu0 0
  %942 = vmatmul.mubr.bf16.gmra.mrb[0].mxu0 %v321
  %v943 = vpop.f32.mrb[0].mxu0
  %v944 = vadd.f32 0.0, %v943
  %v945 = vpop.f32.mrb[0].mxu0
  %v946 = vpop.f32.mrb[0].mxu0
  %v947 = vadd.f32 0.0, %v946
  %v948 = vpop.f32.mrb[0].mxu0
  %949 = vmatprep.mubr.bf16.mxu0 0
  %950 = vmatmul.mubr.bf16.gmra.mrb[0].mxu0 %v322
  %v951 = vpop.f32.mrb[0].mxu0
  %v952 = vadd.f32 0.0, %v951
  %v953 = vpop.f32.mrb[0].mxu0
  %v954 = vpop.f32.mrb[0].mxu0
  %v955 = vadd.f32 0.0, %v954
  %v956 = vpop.f32.mrb[0].mxu0
  %957 = vmatprep.mubr.bf16.mxu0 0
  %958 = vmatmul.mubr.bf16.gmra.mrb[0].mxu0 %v323
  %v959 = vpop.f32.mrb[0].mxu0
  %v960 = vadd.f32 0.0, %v959
  %v961 = vpop.f32.mrb[0].mxu0
  %v962 = vpop.f32.mrb[0].mxu0
  %v963 = vadd.f32 0.0, %v962
  %v964 = vpop.f32.mrb[0].mxu0
  %965 = vmatprep.mubr.bf16.mxu0 0
  %966 = vmatmul.mubr.bf16.gmra.mrb[0].mxu0 %v324
  %v967 = vpop.f32.mrb[0].mxu0
  %v968 = vadd.f32 0.0, %v967
  %v969 = vpop.f32.mrb[0].mxu0
  %v970 = vpop.f32.mrb[0].mxu0
  %v971 = vadd.f32 0.0, %v970
  %v972 = vpop.f32.mrb[0].mxu0
  %973 = vdwg.mxu0
  %974 = vadd.xlane.f32.xlu0 %v912
  %v975 = vpop.xlane.xlu0 %974
  %976 = vadd.xlane.f32.xlu0 %v915
  %v977 = vpop.xlane.xlu0 %976
  %978 = vadd.xlane.f32.xlu0 %v920
  %v979 = vpop.xlane.xlu0 %978
  %980 = vadd.xlane.f32.xlu0 %v923
  %v981 = vpop.xlane.xlu0 %980
  %982 = vadd.xlane.f32.xlu0 %v928
  %v983 = vpop.xlane.xlu0 %982
  %984 = vadd.xlane.f32.xlu0 %v931
  %v985 = vpop.xlane.xlu0 %984
  %986 = vadd.xlane.f32.xlu0 %v936
  %v987 = vpop.xlane.xlu0 %986
  %988 = vadd.xlane.f32.xlu0 %v939
  %v989 = vpop.xlane.xlu0 %988
  %990 = vadd.xlane.f32.xlu0 %v944
  %v991 = vpop.xlane.xlu0 %990
  %992 = vadd.xlane.f32.xlu0 %v947
  %v993 = vpop.xlane.xlu0 %992
  %994 = vadd.xlane.f32.xlu0 %v952
  %v995 = vpop.xlane.xlu0 %994
  %996 = vadd.xlane.f32.xlu0 %v955
  %v997 = vpop.xlane.xlu0 %996
  %998 = vadd.xlane.f32.xlu0 %v960
  %v999 = vpop.xlane.xlu0 %998
  %1000 = vadd.xlane.f32.xlu0 %v963
  %v1001 = vpop.xlane.xlu0 %1000
  %1002 = vadd.xlane.f32.xlu0 %v968
  %v1003 = vpop.xlane.xlu0 %1002
  %1004 = vadd.xlane.f32.xlu0 %v971
  %v1005 = vpop.xlane.xlu0 %1004
  %v1006 = vmul.f32 %v912, %v912
  %v1007 = vmul.f32 %v915, %v915
  %v1008 = vmul.f32 %v920, %v920
  %v1009 = vmul.f32 %v923, %v923
  %v1010 = vmul.f32 %v928, %v928
  %v1011 = vmul.f32 %v931, %v931
  %v1012 = vmul.f32 %v936, %v936
  %v1013 = vmul.f32 %v939, %v939
  %v1014 = vmul.f32 %v944, %v944
  %v1015 = vmul.f32 %v947, %v947
  %v1016 = vmul.f32 %v952, %v952
  %v1017 = vmul.f32 %v955, %v955
  %v1018 = vmul.f32 %v960, %v960
  %v1019 = vmul.f32 %v963, %v963
  %v1020 = vmul.f32 %v968, %v968
  %v1021 = vmul.f32 %v971, %v971
  %1022 = vadd.xlane.f32.xlu0 %v1006
  %v1023 = vpop.xlane.xlu0 %1022
  %1024 = vadd.xlane.f32.xlu0 %v1007
  %v1025 = vpop.xlane.xlu0 %1024
  %1026 = vadd.xlane.f32.xlu0 %v1008
  %v1027 = vpop.xlane.xlu0 %1026
  %1028 = vadd.xlane.f32.xlu0 %v1009
  %v1029 = vpop.xlane.xlu0 %1028
  %1030 = vadd.xlane.f32.xlu0 %v1010
  %v1031 = vpop.xlane.xlu0 %1030
  %1032 = vadd.xlane.f32.xlu0 %v1011
  %v1033 = vpop.xlane.xlu0 %1032
  %1034 = vadd.xlane.f32.xlu0 %v1012
  %v1035 = vpop.xlane.xlu0 %1034
  %1036 = vadd.xlane.f32.xlu0 %v1013
  %v1037 = vpop.xlane.xlu0 %1036
  %1038 = vadd.xlane.f32.xlu0 %v1014
  %v1039 = vpop.xlane.xlu0 %1038
  %1040 = vadd.xlane.f32.xlu0 %v1015
  %v1041 = vpop.xlane.xlu0 %1040
  %1042 = vadd.xlane.f32.xlu0 %v1016
  %v1043 = vpop.xlane.xlu0 %1042
  %1044 = vadd.xlane.f32.xlu0 %v1017
  %v1045 = vpop.xlane.xlu0 %1044
  %1046 = vadd.xlane.f32.xlu0 %v1018
  %v1047 = vpop.xlane.xlu0 %1046
  %1048 = vadd.xlane.f32.xlu0 %v1019
  %v1049 = vpop.xlane.xlu0 %1048
  %1050 = vadd.xlane.f32.xlu0 %v1020
  %v1051 = vpop.xlane.xlu0 %1050
  %1052 = vadd.xlane.f32.xlu0 %v1021
  %v1053 = vpop.xlane.xlu0 %1052
  %v1054 = vmul.f32 %v975, 0.03125
  %v1055 = vmul.f32 %v977, 0.03125
  %v1056 = vmul.f32 %v979, 0.03125
  %v1057 = vmul.f32 %v981, 0.03125
  %v1058 = vmul.f32 %v983, 0.03125
  %v1059 = vmul.f32 %v985, 0.03125
  %v1060 = vmul.f32 %v987, 0.03125
  %v1061 = vmul.f32 %v989, 0.03125
  %v1062 = vmul.f32 %v991, 0.03125
  %v1063 = vmul.f32 %v993, 0.03125
  %v1064 = vmul.f32 %v995, 0.03125
  %v1065 = vmul.f32 %v997, 0.03125
  %v1066 = vmul.f32 %v999, 0.03125
  %v1067 = vmul.f32 %v1001, 0.03125
  %v1068 = vmul.f32 %v1003, 0.03125
  %v1069 = vmul.f32 %v1005, 0.03125
  %v1070 = vmul.f32 %v1023, 0.03125
  %v1071 = vmul.f32 %v1025, 0.03125
  %v1072 = vmul.f32 %v1027, 0.03125
  %v1073 = vmul.f32 %v1029, 0.03125
  %v1074 = vmul.f32 %v1031, 0.03125
  %v1075 = vmul.f32 %v1033, 0.03125
  %v1076 = vmul.f32 %v1035, 0.03125
  %v1077 = vmul.f32 %v1037, 0.03125
  %v1078 = vmul.f32 %v1039, 0.03125
  %v1079 = vmul.f32 %v1041, 0.03125
  %v1080 = vmul.f32 %v1043, 0.03125
  %v1081 = vmul.f32 %v1045, 0.03125
  %v1082 = vmul.f32 %v1047, 0.03125
  %v1083 = vmul.f32 %v1049, 0.03125
  %v1084 = vmul.f32 %v1051, 0.03125
  %v1085 = vmul.f32 %v1053, 0.03125
  %v1086 = vmul.f32 %v1054, %v1054
  %v1087 = vmul.f32 %v1055, %v1055
  %v1088 = vmul.f32 %v1056, %v1056
  %v1089 = vmul.f32 %v1057, %v1057
  %v1090 = vmul.f32 %v1058, %v1058
  %v1091 = vmul.f32 %v1059, %v1059
  %v1092 = vmul.f32 %v1060, %v1060
  %v1093 = vmul.f32 %v1061, %v1061
  %v1094 = vmul.f32 %v1062, %v1062
  %v1095 = vmul.f32 %v1063, %v1063
  %v1096 = vmul.f32 %v1064, %v1064
  %v1097 = vmul.f32 %v1065, %v1065
  %v1098 = vmul.f32 %v1066, %v1066
  %v1099 = vmul.f32 %v1067, %v1067
  %v1100 = vmul.f32 %v1068, %v1068
  %v1101 = vmul.f32 %v1069, %v1069
  %v1102 = vsub.f32 %v1070, %v1086
  %v1103 = vsub.f32 %v1071, %v1087
  %v1104 = vsub.f32 %v1072, %v1088
  %v1105 = vsub.f32 %v1073, %v1089
  %v1106 = vsub.f32 %v1074, %v1090
  %v1107 = vsub.f32 %v1075, %v1091
  %v1108 = vsub.f32 %v1076, %v1092
  %v1109 = vsub.f32 %v1077, %v1093
  %v1110 = vsub.f32 %v1078, %v1094
  %v1111 = vsub.f32 %v1079, %v1095
  %v1112 = vsub.f32 %v1080, %v1096
  %v1113 = vsub.f32 %v1081, %v1097
  %v1114 = vsub.f32 %v1082, %v1098
  %v1115 = vsub.f32 %v1083, %v1099
  %v1116 = vsub.f32 %v1084, %v1100
  %v1117 = vsub.f32 %v1085, %v1101
  %v1118 = vsub.f32 %v912, %v1054
  %v1119 = vsub.f32 %v915, %v1055
  %v1120 = vsub.f32 %v920, %v1056
  %v1121 = vsub.f32 %v923, %v1057
  %v1122 = vsub.f32 %v928, %v1058
  %v1123 = vsub.f32 %v931, %v1059
  %v1124 = vsub.f32 %v936, %v1060
  %v1125 = vsub.f32 %v939, %v1061
  %v1126 = vsub.f32 %v944, %v1062
  %v1127 = vsub.f32 %v947, %v1063
  %v1128 = vsub.f32 %v952, %v1064
  %v1129 = vsub.f32 %v955, %v1065
  %v1130 = vsub.f32 %v960, %v1066
  %v1131 = vsub.f32 %v963, %v1067
  %v1132 = vsub.f32 %v968, %v1068
  %v1133 = vsub.f32 %v971, %v1069
  %v1134 = vadd.f32 %v1102, 1e-05
  %v1135 = vadd.f32 %v1103, 1e-05
  %v1136 = vadd.f32 %v1104, 1e-05
  %v1137 = vadd.f32 %v1105, 1e-05
  %v1138 = vadd.f32 %v1106, 1e-05
  %v1139 = vadd.f32 %v1107, 1e-05
  %v1140 = vadd.f32 %v1108, 1e-05
  %v1141 = vadd.f32 %v1109, 1e-05
  %v1142 = vadd.f32 %v1110, 1e-05
  %v1143 = vadd.f32 %v1111, 1e-05
  %v1144 = vadd.f32 %v1112, 1e-05
  %v1145 = vadd.f32 %v1113, 1e-05
  %v1146 = vadd.f32 %v1114, 1e-05
  %v1147 = vadd.f32 %v1115, 1e-05
  %v1148 = vadd.f32 %v1116, 1e-05
  %v1149 = vadd.f32 %v1117, 1e-05
  %v1150 = vrsqrt.pop %v1134
  %v1151 = vrsqrt.pop %v1135
  %v1152 = vrsqrt.pop %v1136
  %v1153 = vrsqrt.pop %v1137
  %v1154 = vrsqrt.pop %v1138
  %v1155 = vrsqrt.pop %v1139
  %v1156 = vrsqrt.pop %v1140
  %v1157 = vrsqrt.pop %v1141
  %v1158 = vrsqrt.pop %v1142
  %v1159 = vrsqrt.pop %v1143
  %v1160 = vrsqrt.pop %v1144
  %v1161 = vrsqrt.pop %v1145
  %v1162 = vrsqrt.pop %v1146
  %v1163 = vrsqrt.pop %v1147
  %v1164 = vrsqrt.pop %v1148
  %v1165 = vrsqrt.pop %v1149
  %v1166 = vmul.f32 %v1118, %v1150
  %v1167 = vmul.f32 %v1119, %v1151
  %v1168 = vmul.f32 %v1120, %v1152
  %v1169 = vmul.f32 %v1121, %v1153
  %v1170 = vmul.f32 %v1122, %v1154
  %v1171 = vmul.f32 %v1123, %v1155
  %v1172 = vmul.f32 %v1124, %v1156
  %v1173 = vmul.f32 %v1125, %v1157
  %v1174 = vmul.f32 %v1126, %v1158
  %v1175 = vmul.f32 %v1127, %v1159
  %v1176 = vmul.f32 %v1128, %v1160
  %v1177 = vmul.f32 %v1129, %v1161
  %v1178 = vmul.f32 %v1130, %v1162
  %v1179 = vmul.f32 %v1131, %v1163
  %v1180 = vmul.f32 %v1132, %v1164
  %v1181 = vmul.f32 %v1133, %v1165
  %v1182 = vld [vmem:[%s6] sm:$0x1]
  %v1184 = vlaneseq
  %v1185 = vshrl.u32 %v1184, 7
  %v1186 = vsub.s32 0, %v1185
  %v1187 = vrot.slane %v1182, %v1186
  %v1189 = vmul.f32 %v1166, %v1187
  %v1190 = vmul.f32 %v1167, %v1187
  %v1191 = vmul.f32 %v1168, %v1187
  %v1192 = vmul.f32 %v1169, %v1187
  %v1193 = vmul.f32 %v1170, %v1187
  %v1194 = vmul.f32 %v1171, %v1187
  %v1195 = vmul.f32 %v1172, %v1187
  %v1196 = vmul.f32 %v1173, %v1187
  %v1197 = vmul.f32 %v1174, %v1187
  %v1198 = vmul.f32 %v1175, %v1187
  %v1199 = vmul.f32 %v1176, %v1187
  %v1200 = vmul.f32 %v1177, %v1187
  %v1201 = vmul.f32 %v1178, %v1187
  %v1202 = vmul.f32 %v1179, %v1187
  %v1203 = vmul.f32 %v1180, %v1187
  %v1204 = vmul.f32 %v1181, %v1187
  %v1205 = vld [vmem:[%s7] sm:$0x1]
  %v1207 = vlaneseq
  %v1208 = vshrl.u32 %v1207, 7
  %v1209 = vsub.s32 0, %v1208
  %v1210 = vrot.slane %v1205, %v1209
  %v1212 = vadd.f32 %v1189, %v1210
  %v1213 = vadd.f32 %v1190, %v1210
  %v1214 = vadd.f32 %v1191, %v1210
  %v1215 = vadd.f32 %v1192, %v1210
  %v1216 = vadd.f32 %v1193, %v1210
  %v1217 = vadd.f32 %v1194, %v1210
  %v1218 = vadd.f32 %v1195, %v1210
  %v1219 = vadd.f32 %v1196, %v1210
  %v1220 = vadd.f32 %v1197, %v1210
  %v1221 = vadd.f32 %v1198, %v1210
  %v1222 = vadd.f32 %v1199, %v1210
  %v1223 = vadd.f32 %v1200, %v1210
  %v1224 = vadd.f32 %v1201, %v1210
  %v1225 = vadd.f32 %v1202, %v1210
  %v1226 = vadd.f32 %v1203, %v1210
  %v1227 = vadd.f32 %v1204, %v1210
  %v1228 = vmax.f32 %v1212, 0.0
  %v1229 = vmax.f32 %v1213, 0.0
  %v1230 = vmax.f32 %v1214, 0.0
  %v1231 = vmax.f32 %v1215, 0.0
  %v1232 = vmax.f32 %v1216, 0.0
  %v1233 = vmax.f32 %v1217, 0.0
  %v1234 = vmax.f32 %v1218, 0.0
  %v1235 = vmax.f32 %v1219, 0.0
  %v1236 = vmax.f32 %v1220, 0.0
  %v1237 = vmax.f32 %v1221, 0.0
  %v1238 = vmax.f32 %v1222, 0.0
  %v1239 = vmax.f32 %v1223, 0.0
  %v1240 = vmax.f32 %v1224, 0.0
  %v1241 = vmax.f32 %v1225, 0.0
  %v1242 = vmax.f32 %v1226, 0.0
  %v1243 = vmax.f32 %v1227, 0.0
  %v1244 = vpack.c.bf16 %v1229, %v1228
  %v1245 = vpack.c.bf16 %v1231, %v1230
  %v1246 = vpack.c.bf16 %v1233, %v1232
  %v1247 = vpack.c.bf16 %v1235, %v1234
  %v1248 = vpack.c.bf16 %v1237, %v1236
  %v1249 = vpack.c.bf16 %v1239, %v1238
  %v1250 = vpack.c.bf16 %v1241, %v1240
  %v1251 = vpack.c.bf16 %v1243, %v1242
  %v1252 = vld [vmem:[%s8] sm:$0xf]
  %v1253 = vld [vmem:[%s8 + $0x4] sm:$0xf]
  %v1254 = vld [vmem:[%s8 + $0x8] sm:$0xf]
  %v1255 = vld [vmem:[%s8 + $0xc] sm:$0xf]
  %v1256 = vld [vmem:[%s8 + $0x10] sm:$0xf]
  %v1257 = vld [vmem:[%s8 + $0x14] sm:$0xf]
  %v1258 = vld [vmem:[%s8 + $0x18] sm:$0xf]
  %v1259 = vld [vmem:[%s8 + $0x1c] sm:$0xf]
  %v1260 = vld [vmem:[%s8 + $0x20] sm:$0xf]
  %v1261 = vld [vmem:[%s8 + $0x24] sm:$0xf]
  %v1262 = vld [vmem:[%s8 + $0x28] sm:$0xf]
  %v1263 = vld [vmem:[%s8 + $0x2c] sm:$0xf]
  %v1264 = vld [vmem:[%s8 + $0x30] sm:$0xf]
  %v1265 = vld [vmem:[%s8 + $0x34] sm:$0xf]
  %v1266 = vld [vmem:[%s8 + $0x38] sm:$0xf]
  %v1267 = vld [vmem:[%s8 + $0x3c] sm:$0xf]
  %v1268 = vld [vmem:[%s9] sm:$0x1]
  %v1270 = vlaneseq
  %v1271 = vshrl.u32 %v1270, 7
  %v1272 = vsub.s32 0, %v1271
  %v1273 = vrot.slane %v1268, %v1272
  %v1291 = vunpack.c.l.b16 %v1252
  %v1292 = vunpack.c.l.b16 %v1253
  %v1293 = vunpack.c.l.b16 %v1254
  %v1294 = vunpack.c.l.b16 %v1255
  %v1295 = vunpack.c.l.b16 %v1256
  %v1296 = vunpack.c.l.b16 %v1257
  %v1297 = vunpack.c.l.b16 %v1258
  %v1298 = vunpack.c.l.b16 %v1259
  %v1299 = vunpack.c.l.b16 %v1260
  %v1300 = vunpack.c.l.b16 %v1261
  %v1301 = vunpack.c.l.b16 %v1262
  %v1302 = vunpack.c.l.b16 %v1263
  %v1303 = vunpack.c.l.b16 %v1264
  %v1304 = vunpack.c.l.b16 %v1265
  %v1305 = vunpack.c.l.b16 %v1266
  %v1306 = vunpack.c.l.b16 %v1267
  %v1307 = vpack.c.b16 %v1292, %v1291
  %v1308 = vpack.c.b16 %v1294, %v1293
  %v1309 = vpack.c.b16 %v1296, %v1295
  %v1310 = vpack.c.b16 %v1298, %v1297
  %v1311 = vpack.c.b16 %v1300, %v1299
  %v1312 = vpack.c.b16 %v1302, %v1301
  %v1313 = vpack.c.b16 %v1304, %v1303
  %v1314 = vpack.c.b16 %v1306, %v1305
  %1323 = vmatprep.subr.bf16.mxu0 0
  %1324 = vmatpush1.bf16.msra.mxu0 %v1307
  %1325 = vmatprep.subr.bf16.mxu0 0
  %1326 = vmatpush1.bf16.msra.mxu0 %v1308
  %1327 = vmatprep.subr.bf16.mxu0 0
  %1328 = vmatpush1.bf16.msra.mxu0 %v1309
  %1329 = vmatprep.subr.bf16.mxu0 0
  %1330 = vmatpush1.bf16.msra.mxu0 %v1310
  %1331 = vmatprep.subr.bf16.mxu0 0
  %1332 = vmatpush1.bf16.msra.mxu0 %v1311
  %1333 = vmatprep.subr.bf16.mxu0 0
  %1334 = vmatpush1.bf16.msra.mxu0 %v1312
  %1335 = vmatprep.subr.bf16.mxu0 0
  %1336 = vmatpush1.bf16.msra.mxu0 %v1313
  %1337 = vmatprep.subr.bf16.mxu0 0
  %1338 = vmatpush1.bf16.msra.mxu0 %v1314
  %1339 = vmatprep.subr.bf16.mxu0 0
  %1340 = vmatpush1.bf16.msra.mxu0 0
  %1341 = vmatprep.subr.bf16.mxu0 0
  %1342 = vmatpush1.bf16.msra.mxu0 0
  %1343 = vmatprep.subr.bf16.mxu0 0
  %1344 = vmatpush1.bf16.msra.mxu0 0
  %1345 = vmatprep.subr.bf16.mxu0 0
  %1346 = vmatpush1.bf16.msra.mxu0 0
  %1347 = vmatprep.subr.bf16.mxu0 0
  %1348 = vmatpush1.bf16.msra.mxu0 0
  %1349 = vmatprep.subr.bf16.mxu0 0
  %1350 = vmatpush1.bf16.msra.mxu0 0
  %1351 = vmatprep.subr.bf16.mxu0 0
  %1352 = vmatpush1.bf16.msra.mxu0 0
  %1353 = vmatprep.subr.bf16.mxu0 0
  %1354 = vmatpush1.bf16.msra.mxu0 0
  %1355 = vmatprep.mubr.bf16.mxu0 0
  %1356 = vmatmul.mubr.bf16.gmra.mrb[0].mxu0 %v1244
  %v1357 = vpop.f32.mrb[0].mxu0
  %v1358 = vadd.f32 %v1273, %v1357
  %v1359 = vpop.f32.mrb[0].mxu0
  %v1360 = vpop.f32.mrb[0].mxu0
  %v1361 = vadd.f32 %v1273, %v1360
  %v1362 = vpop.f32.mrb[0].mxu0
  %1363 = vmatprep.mubr.bf16.mxu0 0
  %1364 = vmatmul.mubr.bf16.gmra.mrb[0].mxu0 %v1245
  %v1365 = vpop.f32.mrb[0].mxu0
  %v1366 = vadd.f32 %v1273, %v1365
  %v1367 = vpop.f32.mrb[0].mxu0
  %v1368 = vpop.f32.mrb[0].mxu0
  %v1369 = vadd.f32 %v1273, %v1368
  %v1370 = vpop.f32.mrb[0].mxu0
  %1371 = vmatprep.mubr.bf16.mxu0 0
  %1372 = vmatmul.mubr.bf16.gmra.mrb[0].mxu0 %v1246
  %v1373 = vpop.f32.mrb[0].mxu0
  %v1374 = vadd.f32 %v1273, %v1373
  %v1375 = vpop.f32.mrb[0].mxu0
  %v1376 = vpop.f32.mrb[0].mxu0
  %v1377 = vadd.f32 %v1273, %v1376
  %v1378 = vpop.f32.mrb[0].mxu0
  %1379 = vmatprep.mubr.bf16.mxu0 0
  %1380 = vmatmul.mubr.bf16.gmra.mrb[0].mxu0 %v1247
  %v1381 = vpop.f32.mrb[0].mxu0
  %v1382 = vadd.f32 %v1273, %v1381
  %v1383 = vpop.f32.mrb[0].mxu0
  %v1384 = vpop.f32.mrb[0].mxu0
  %v1385 = vadd.f32 %v1273, %v1384
  %v1386 = vpop.f32.mrb[0].mxu0
  %1387 = vmatprep.mubr.bf16.mxu0 0
  %1388 = vmatmul.mubr.bf16.gmra.mrb[0].mxu0 %v1248
  %v1389 = vpop.f32.mrb[0].mxu0
  %v1390 = vadd.f32 %v1273, %v1389
  %v1391 = vpop.f32.mrb[0].mxu0
  %v1392 = vpop.f32.mrb[0].mxu0
  %v1393 = vadd.f32 %v1273, %v1392
  %v1394 = vpop.f32.mrb[0].mxu0
  %1395 = vmatprep.mubr.bf16.mxu0 0
  %1396 = vmatmul.mubr.bf16.gmra.mrb[0].mxu0 %v1249
  %v1397 = vpop.f32.mrb[0].mxu0
  %v1398 = vadd.f32 %v1273, %v1397
  %v1399 = vpop.f32.mrb[0].mxu0
  %v1400 = vpop.f32.mrb[0].mxu0
  %v1401 = vadd.f32 %v1273, %v1400
  %v1402 = vpop.f32.mrb[0].mxu0
  %1403 = vmatprep.mubr.bf16.mxu0 0
  %1404 = vmatmul.mubr.bf16.gmra.mrb[0].mxu0 %v1250
  %v1405 = vpop.f32.mrb[0].mxu0
  %v1406 = vadd.f32 %v1273, %v1405
  %v1407 = vpop.f32.mrb[0].mxu0
  %v1408 = vpop.f32.mrb[0].mxu0
  %v1409 = vadd.f32 %v1273, %v1408
  %v1410 = vpop.f32.mrb[0].mxu0
  %1411 = vmatprep.mubr.bf16.mxu0 0
  %1412 = vmatmul.mubr.bf16.gmra.mrb[0].mxu0 %v1251
  %v1413 = vpop.f32.mrb[0].mxu0
  %v1414 = vadd.f32 %v1273, %v1413
  %v1415 = vpop.f32.mrb[0].mxu0
  %v1416 = vpop.f32.mrb[0].mxu0
  %v1417 = vadd.f32 %v1273, %v1416
  %v1418 = vpop.f32.mrb[0].mxu0
  %1419 = vdwg.mxu0
  %v1420 = vlaneseq
  %v1421 = vand.u32 %v1420, 127
  %vm1422 = vcmp.lt.s32.totalorder %v1421, 8
  %v1423 = vsel %vm1422, %v1358, -1e+30
  %v1424 = vsel %vm1422, %v1361, -1e+30
  %v1425 = vsel %vm1422, %v1366, -1e+30
  %v1426 = vsel %vm1422, %v1369, -1e+30
  %v1427 = vsel %vm1422, %v1374, -1e+30
  %v1428 = vsel %vm1422, %v1377, -1e+30
  %v1429 = vsel %vm1422, %v1382, -1e+30
  %v1430 = vsel %vm1422, %v1385, -1e+30
  %v1431 = vsel %vm1422, %v1390, -1e+30
  %v1432 = vsel %vm1422, %v1393, -1e+30
  %v1433 = vsel %vm1422, %v1398, -1e+30
  %v1434 = vsel %vm1422, %v1401, -1e+30
  %v1435 = vsel %vm1422, %v1406, -1e+30
  %v1436 = vsel %vm1422, %v1409, -1e+30
  %v1437 = vsel %vm1422, %v1414, -1e+30
  %v1438 = vsel %vm1422, %v1417, -1e+30
  %1439 = vmax.xlane.f32.xlu0 %v1423
  %v1440 = vpop.xlane.xlu0 %1439
  %1441 = vmax.xlane.f32.xlu0 %v1424
  %v1442 = vpop.xlane.xlu0 %1441
  %1443 = vmax.xlane.f32.xlu0 %v1425
  %v1444 = vpop.xlane.xlu0 %1443
  %1445 = vmax.xlane.f32.xlu0 %v1426
  %v1446 = vpop.xlane.xlu0 %1445
  %1447 = vmax.xlane.f32.xlu0 %v1427
  %v1448 = vpop.xlane.xlu0 %1447
  %1449 = vmax.xlane.f32.xlu0 %v1428
  %v1450 = vpop.xlane.xlu0 %1449
  %1451 = vmax.xlane.f32.xlu0 %v1429
  %v1452 = vpop.xlane.xlu0 %1451
  %1453 = vmax.xlane.f32.xlu0 %v1430
  %v1454 = vpop.xlane.xlu0 %1453
  %1455 = vmax.xlane.f32.xlu0 %v1431
  %v1456 = vpop.xlane.xlu0 %1455
  %1457 = vmax.xlane.f32.xlu0 %v1432
  %v1458 = vpop.xlane.xlu0 %1457
  %1459 = vmax.xlane.f32.xlu0 %v1433
  %v1460 = vpop.xlane.xlu0 %1459
  %1461 = vmax.xlane.f32.xlu0 %v1434
  %v1462 = vpop.xlane.xlu0 %1461
  %1463 = vmax.xlane.f32.xlu0 %v1435
  %v1464 = vpop.xlane.xlu0 %1463
  %1465 = vmax.xlane.f32.xlu0 %v1436
  %v1466 = vpop.xlane.xlu0 %1465
  %1467 = vmax.xlane.f32.xlu0 %v1437
  %v1468 = vpop.xlane.xlu0 %1467
  %1469 = vmax.xlane.f32.xlu0 %v1438
  %v1470 = vpop.xlane.xlu0 %1469
  %v1471 = vsub.f32 %v1423, %v1440
  %v1472 = vsub.f32 %v1424, %v1442
  %v1473 = vsub.f32 %v1425, %v1444
  %v1474 = vsub.f32 %v1426, %v1446
  %v1475 = vsub.f32 %v1427, %v1448
  %v1476 = vsub.f32 %v1428, %v1450
  %v1477 = vsub.f32 %v1429, %v1452
  %v1478 = vsub.f32 %v1430, %v1454
  %v1479 = vsub.f32 %v1431, %v1456
  %v1480 = vsub.f32 %v1432, %v1458
  %v1481 = vsub.f32 %v1433, %v1460
  %v1482 = vsub.f32 %v1434, %v1462
  %v1483 = vsub.f32 %v1435, %v1464
  %v1484 = vsub.f32 %v1436, %v1466
  %v1485 = vsub.f32 %v1437, %v1468
  %v1486 = vsub.f32 %v1438, %v1470
  %v1487 = vmul.f32 %v1471, 1.442695
  %v1488 = vpow.pop %v1487
  %v1489 = vmul.f32 %v1472, 1.442695
  %v1490 = vpow.pop %v1489
  %v1491 = vmul.f32 %v1473, 1.442695
  %v1492 = vpow.pop %v1491
  %v1493 = vmul.f32 %v1474, 1.442695
  %v1494 = vpow.pop %v1493
  %v1495 = vmul.f32 %v1475, 1.442695
  %v1496 = vpow.pop %v1495
  %v1497 = vmul.f32 %v1476, 1.442695
  %v1498 = vpow.pop %v1497
  %v1499 = vmul.f32 %v1477, 1.442695
  %v1500 = vpow.pop %v1499
  %v1501 = vmul.f32 %v1478, 1.442695
  %v1502 = vpow.pop %v1501
  %v1503 = vmul.f32 %v1479, 1.442695
  %v1504 = vpow.pop %v1503
  %v1505 = vmul.f32 %v1480, 1.442695
  %v1506 = vpow.pop %v1505
  %v1507 = vmul.f32 %v1481, 1.442695
  %v1508 = vpow.pop %v1507
  %v1509 = vmul.f32 %v1482, 1.442695
  %v1510 = vpow.pop %v1509
  %v1511 = vmul.f32 %v1483, 1.442695
  %v1512 = vpow.pop %v1511
  %v1513 = vmul.f32 %v1484, 1.442695
  %v1514 = vpow.pop %v1513
  %v1515 = vmul.f32 %v1485, 1.442695
  %v1516 = vpow.pop %v1515
  %v1517 = vmul.f32 %v1486, 1.442695
  %v1518 = vpow.pop %v1517
  %1519 = vadd.xlane.f32.xlu0 %v1488
  %v1520 = vpop.xlane.xlu0 %1519
  %1521 = vadd.xlane.f32.xlu0 %v1490
  %v1522 = vpop.xlane.xlu0 %1521
  %1523 = vadd.xlane.f32.xlu0 %v1492
  %v1524 = vpop.xlane.xlu0 %1523
  %1525 = vadd.xlane.f32.xlu0 %v1494
  %v1526 = vpop.xlane.xlu0 %1525
  %1527 = vadd.xlane.f32.xlu0 %v1496
  %v1528 = vpop.xlane.xlu0 %1527
  %1529 = vadd.xlane.f32.xlu0 %v1498
  %v1530 = vpop.xlane.xlu0 %1529
  %1531 = vadd.xlane.f32.xlu0 %v1500
  %v1532 = vpop.xlane.xlu0 %1531
  %1533 = vadd.xlane.f32.xlu0 %v1502
  %v1534 = vpop.xlane.xlu0 %1533
  %1535 = vadd.xlane.f32.xlu0 %v1504
  %v1536 = vpop.xlane.xlu0 %1535
  %1537 = vadd.xlane.f32.xlu0 %v1506
  %v1538 = vpop.xlane.xlu0 %1537
  %1539 = vadd.xlane.f32.xlu0 %v1508
  %v1540 = vpop.xlane.xlu0 %1539
  %1541 = vadd.xlane.f32.xlu0 %v1510
  %v1542 = vpop.xlane.xlu0 %1541
  %1543 = vadd.xlane.f32.xlu0 %v1512
  %v1544 = vpop.xlane.xlu0 %1543
  %1545 = vadd.xlane.f32.xlu0 %v1514
  %v1546 = vpop.xlane.xlu0 %1545
  %1547 = vadd.xlane.f32.xlu0 %v1516
  %v1548 = vpop.xlane.xlu0 %1547
  %1549 = vadd.xlane.f32.xlu0 %v1518
  %v1550 = vpop.xlane.xlu0 %1549
  %v1551 = vlog2.pop %v1520
  %v1552 = vmul.f32 %v1551, 0.6931472
  %v1553 = vlog2.pop %v1522
  %v1554 = vmul.f32 %v1553, 0.6931472
  %v1555 = vlog2.pop %v1524
  %v1556 = vmul.f32 %v1555, 0.6931472
  %v1557 = vlog2.pop %v1526
  %v1558 = vmul.f32 %v1557, 0.6931472
  %v1559 = vlog2.pop %v1528
  %v1560 = vmul.f32 %v1559, 0.6931472
  %v1561 = vlog2.pop %v1530
  %v1562 = vmul.f32 %v1561, 0.6931472
  %v1563 = vlog2.pop %v1532
  %v1564 = vmul.f32 %v1563, 0.6931472
  %v1565 = vlog2.pop %v1534
  %v1566 = vmul.f32 %v1565, 0.6931472
  %v1567 = vlog2.pop %v1536
  %v1568 = vmul.f32 %v1567, 0.6931472
  %v1569 = vlog2.pop %v1538
  %v1570 = vmul.f32 %v1569, 0.6931472
  %v1571 = vlog2.pop %v1540
  %v1572 = vmul.f32 %v1571, 0.6931472
  %v1573 = vlog2.pop %v1542
  %v1574 = vmul.f32 %v1573, 0.6931472
  %v1575 = vlog2.pop %v1544
  %v1576 = vmul.f32 %v1575, 0.6931472
  %v1577 = vlog2.pop %v1546
  %v1578 = vmul.f32 %v1577, 0.6931472
  %v1579 = vlog2.pop %v1548
  %v1580 = vmul.f32 %v1579, 0.6931472
  %v1581 = vlog2.pop %v1550
  %v1582 = vmul.f32 %v1581, 0.6931472
  %v1583 = vsub.f32 %v1471, %v1552
  %v1584 = vsub.f32 %v1472, %v1554
  %v1585 = vsub.f32 %v1473, %v1556
  %v1586 = vsub.f32 %v1474, %v1558
  %v1587 = vsub.f32 %v1475, %v1560
  %v1588 = vsub.f32 %v1476, %v1562
  %v1589 = vsub.f32 %v1477, %v1564
  %v1590 = vsub.f32 %v1478, %v1566
  %v1591 = vsub.f32 %v1479, %v1568
  %v1592 = vsub.f32 %v1480, %v1570
  %v1593 = vsub.f32 %v1481, %v1572
  %v1594 = vsub.f32 %v1482, %v1574
  %v1595 = vsub.f32 %v1483, %v1576
  %v1596 = vsub.f32 %v1484, %v1578
  %v1597 = vsub.f32 %v1485, %v1580
  %v1598 = vsub.f32 %v1486, %v1582
  %1599 = vst [vmem:[%s10] sm:$0xff] %v1583
  %1600 = vst [vmem:[%s10 + $0x8] sm:$0xff] %v1584
  %1601 = vst [vmem:[%s10 + $0x10] sm:$0xff] %v1585
  %1602 = vst [vmem:[%s10 + $0x18] sm:$0xff] %v1586
  %1603 = vst [vmem:[%s10 + $0x20] sm:$0xff] %v1587
  %1604 = vst [vmem:[%s10 + $0x28] sm:$0xff] %v1588
  %1605 = vst [vmem:[%s10 + $0x30] sm:$0xff] %v1589
  %1606 = vst [vmem:[%s10 + $0x38] sm:$0xff] %v1590
  %1607 = vst [vmem:[%s10 + $0x40] sm:$0xff] %v1591
  %1608 = vst [vmem:[%s10 + $0x48] sm:$0xff] %v1592
  %1609 = vst [vmem:[%s10 + $0x50] sm:$0xff] %v1593
  %1610 = vst [vmem:[%s10 + $0x58] sm:$0xff] %v1594
  %1611 = vst [vmem:[%s10 + $0x60] sm:$0xff] %v1595
  %1612 = vst [vmem:[%s10 + $0x68] sm:$0xff] %v1596
  %1613 = vst [vmem:[%s10 + $0x70] sm:$0xff] %v1597
  %1614 = vst [vmem:[%s10 + $0x78] sm:$0xff] %v1598
  // Predicated region
  $region42: #{gcn_forward.1} parent=0 // pred_check
    _
  $region43: #{gcn_forward.1} parent=0 // pred_check_branch
    %1616 = sbr.rel (0) target = $region45
  $region44: #{gcn_forward.1} parent=0 // pred_region
    _
  $region45: #{gcn_forward.1} parent=0 // pred_fallthru
    _
  // Predicated region
  $region46: #{gcn_forward.1} parent=0 // pred_check
    _
  $region47: #{gcn_forward.1} parent=0 // pred_check_branch
    %1618 = sbr.rel (0) target = $region49
  $region48: #{gcn_forward.1} parent=0 // pred_region
    _
  $region49: #{gcn_forward.1} parent=0 // pred_fallthru
    _

</llo_original>
